<compile_context>
chip_gen: v7x
topology: tpu7x:2x2x1
jax: 0.10.0
libtpu: 0.0.40
codegen_flags: <defaults>
</compile_context>

<pallas_src>
import functools

import jax
import jax.numpy as jnp
from jax.experimental import pallas as pl
from jax.experimental.pallas import tpu as pltpu


def _round_up(n, m):
    return ((n + m - 1) // m) * m


def _pick_chunk(num_tokens):
    """Codebook-axis chunk: full T when small, else a 128-aligned divisor."""
    if num_tokens <= 512:
        return num_tokens
    for c in (512, 256, 128):
        if num_tokens % c == 0:
            return c
    return num_tokens  # fall back to a single chunk


def _rank4_smallest(work, idx_like, sentinel):
    """Four smallest per row.

    work:     (TN, W) f32 scores.
    idx_like: (1, W) or (TN, W) int32 ids (broadcast in the compares; no
              (TN, W) iota is materialized by the caller).
    Returns ([4 x (TN,1) values], [4 x (TN,1) int32 ids], rank-0 hit mask).
    Tie-break: lowest id (matches argmin / lax.top_k first-occurrence).
    """
    vals, idxs = [], []
    mask0 = None
    for r in range(4):
        mv = jnp.min(work, axis=1, keepdims=True)                    # (TN, 1)
        mi = jnp.min(jnp.where(work == mv, idx_like, sentinel),
                     axis=1, keepdims=True)                          # (TN, 1)
        vals.append(mv)
        idxs.append(mi)
        if r < 3:
            hit = (idx_like == mi)                                   # (TN, W)
            if r == 0:
                mask0 = hit
            work = jnp.where(hit, jnp.float32(jnp.inf), work)
    return vals, idxs, mask0


def _soho_vd_kernel(x_ref, embed_ref, e2_ref, quant_ref, packed_ref):
    x = x_ref[...].astype(jnp.float32)          # (TN, D)
    e = embed_ref[...].astype(jnp.float32)      # (T,  D)  VMEM-resident
    e2 = e2_ref[...]                            # (1,  T)  == sum(e**2, 1)

    tn = x.shape[0]
    num_tokens, dim = e.shape
    chunk = _pick_chunk(num_tokens)
    nc = num_tokens // chunk

    # dist = ||x||^2 + ||e||^2 - 2 x e^T.  The row-constant ||x||^2 never
    # changes per-row ordering -> rank on scores = ||e||^2 - 2 x e^T.  Fold
    # the -2 into the narrow (TN, D) operand before the MXU matmul.
    xm2 = x * jnp.float32(-2.0)

    cand_v, cand_i = [], []
    mask0 = None
    for c in range(nc):
        lo = c * chunk
        e_c = e if nc == 1 else e[lo:lo + chunk, :]                  # (Tc, D)
        e2_c = e2 if nc == 1 else e2[:, lo:lo + chunk]               # (1, Tc)
        sc = jax.lax.dot_general(xm2, e_c, (((1,), (1,)), ((), ())),
                                 preferred_element_type=jnp.float32)
        sc = sc + e2_c                                               # (TN, Tc)
        iota_c = jax.lax.broadcasted_iota(jnp.int32, (1, chunk), 1) + lo
        v_c, i_c, m0_c = _rank4_smallest(sc, iota_c, num_tokens)
        cand_v.extend(v_c)
        cand_i.extend(i_c)
        if nc == 1:
            mask0 = m0_c

    if nc == 1:
        vals, idxs = cand_v, cand_i                  # 4 x (TN, 1) each
    else:
        # Merge the nc * 4 per-chunk candidates (cheap: width 4*nc).
        vals, idxs, _ = _rank4_smallest(jnp.concatenate(cand_v, axis=1),
                                        jnp.concatenate(cand_i, axis=1),
                                        num_tokens)

    # ---- quantize = embed[argmin] via one-hot matmul ----------------------
    idx0 = idxs[0]                                                   # (TN, 1)
    if nc == 1:
        quant = jnp.dot(mask0.astype(jnp.float32), e,                # reuse mask
                        preferred_element_type=jnp.float32)
    else:
        quant = jnp.zeros((tn, dim), jnp.float32)
        for c in range(nc):
            lo = c * chunk
            iota_c = jax.lax.broadcasted_iota(jnp.int32, (1, chunk), 1) + lo
            oh = (iota_c == idx0).astype(jnp.float32)                # (TN, Tc)
            quant = quant + jnp.dot(oh, e[lo:lo + chunk, :],
                                    preferred_element_type=jnp.float32)
    quant_ref[...] = quant.astype(quant_ref.dtype)

    # ---- ranks 1..3: add back ||x||^2, L2-normalize, invert, softmax ------
    x2 = jnp.sum(x * x, axis=1, keepdims=True)                       # (TN, 1)
    dvals = jnp.concatenate([vals[1], vals[2], vals[3]], axis=1) + x2  # (TN,3)
    nrm = jnp.maximum(
        jnp.sqrt(jnp.sum(dvals * dvals, axis=1, keepdims=True)), 1e-12)
    w = 1.0 / (dvals / nrm + 1e-4)
    m = jnp.max(w, axis=1, keepdims=True)
    ew = jnp.exp(w - m)
    soft = ew / jnp.sum(ew, axis=1, keepdims=True)                   # (TN, 3)

    # ---- single dense packed store: [enc, i1, i2, i3, bits(v1..v3), pad] ---
    packed_ref[...] = jnp.concatenate(
        [idxs[0], idxs[1], idxs[2], idxs[3],
         pltpu.bitcast(soft, jnp.int32),
         jnp.zeros((tn, 1), jnp.int32)], axis=1)                     # (TN, 8)


@functools.partial(jax.jit, static_argnames=("tile_n",))
def soho_pre_vd_forward(inputs_flatten, embed, *, tile_n=512):
    """Pallas implementation of SOHO_Pre_VD.forward (straight-through value)."""
    N, D = inputs_flatten.shape
    T, _ = embed.shape

    # --- tile sizing -------------------------------------------------------
    # 128-row granularity (MXU M granularity, avoids over-padding small N).
    # Cap the tile when the codebook is large so the per-step (tile, Tc)
    # working set stays within scoped VMEM on v5e (16 MiB) / v7x (32 MiB).
    padded_N = _round_up(N, 128)
    units = padded_N // 128
    cap_units = max(1, (256 if T >= 2048 else int(tile_n)) // 128)
    tk = 1
    for k in range(1, units + 1):              # largest divisor <= cap: no extra pad
        if units % k == 0 and k <= cap_units:
            tk = k
    # Prefer >= 2 grid steps when it costs no extra padding (v7x: 2 TensorCores).
    if tk == units and units > 1 and units % 2 == 0:
        tk = units // 2
    tile = tk * 128
    padded_N = _round_up(N, tile)

    x_p = inputs_flatten
    if padded_N != N:
        x_p = jnp.pad(inputs_flatten, ((0, padded_N - N), (0, 0)))

    # Codebook squared norms (1, T): VMEM-resident across the grid.
    e2 = jnp.sum(embed.astype(jnp.float32) ** 2, axis=1, keepdims=True).T

    q_dtype = jnp.promote_types(inputs_flatten.dtype, embed.dtype)
    grid = (padded_N // tile,)
    out_shape = (
        jax.ShapeDtypeStruct((padded_N, D), q_dtype),    # quantize
        jax.ShapeDtypeStruct((padded_N, 8), jnp.int32),  # packed small outputs
    )
    cost = pl.CostEstimate(
        flops=4 * padded_N * T * D + 24 * padded_N * T,
        transcendentals=3 * padded_N,
        bytes_accessed=padded_N * D * 8 + T * D * 4 + T * 4 + padded_N * 32,
    )
    quant, packed = pl.pallas_call(
        _soho_vd_kernel,
        out_shape=out_shape,
        grid_spec=pltpu.PrefetchScalarGridSpec(
            num_scalar_prefetch=0,
            grid=grid,
            in_specs=[
                pl.BlockSpec((tile, D), lambda i: (i, 0)),   # streamed x
                pl.BlockSpec((T, D), lambda i: (0, 0)),      # resident codebook
                pl.BlockSpec((1, T), lambda i: (0, 0)),      # resident ||e||^2
            ],
            out_specs=[
                pl.BlockSpec((tile, D), lambda i: (i, 0)),   # quantize
                pl.BlockSpec((tile, 8), lambda i: (i, 0)),   # packed outputs
            ],
        ),
        compiler_params=pltpu.CompilerParams(
            dimension_semantics=("parallel",)),
        cost_estimate=cost,
    )(x_p, embed, e2)

    quant = quant[:N]
    packed = packed[:N]
    enc_idx = packed[:, 0:1]
    topk_i = packed[:, 1:4]
    topk_v = jax.lax.bitcast_convert_type(packed[:, 4:7], jnp.float32)
    return quant, enc_idx, topk_v, topk_i


def _reference_forward(x, embed):
    """Pure-JAX reference mirroring the PyTorch module."""
    d = (jnp.sum(x ** 2, axis=1, keepdims=True)
         + jnp.sum(embed ** 2, axis=1)[None, :]
         - 2.0 * x @ embed.T)
    neg_vals, idxs = jax.lax.top_k(-d, 4)
    vals = -neg_vals
    tv, ti = vals[:, 1:], idxs[:, 1:]
    nrm = jnp.maximum(jnp.linalg.norm(tv, axis=1, keepdims=True), 1e-12)
    tv = 1.0 / (tv / nrm + 1e-4)
    tv = jax.nn.softmax(tv, axis=1)
    enc = jnp.argmin(d, axis=1)[:, None]
    quant = embed[enc[:, 0]]
    return quant, enc, tv, ti


if __name__ == "__main__":
    num_tokens = 128     # codebook size
    token_dim = 32       # feature dim
    N = 64               # e.g. batch=2 x 32 flattened spatial positions

    key = jax.random.PRNGKey(0)
    kx, ke = jax.random.split(key)
    x = jax.random.normal(kx, (N, token_dim), dtype=jnp.float32)
    # nn.init.normal_(self.embed): standard-normal codebook (deterministic here)
    embed = jax.random.normal(ke, (num_tokens, token_dim), dtype=jnp.float32)

    quant, enc_idx, topk_v, topk_i = soho_pre_vd_forward(x, embed)
    jax.block_until_ready((quant, enc_idx, topk_v, topk_i))

    # correctness check against pure-JAX reference
    r_quant, r_enc, r_tv, r_ti = _reference_forward(x, embed)
    assert jnp.all(enc_idx == r_enc.astype(jnp.int32)), "encoding indices mismatch"
    assert jnp.all(topk_i == r_ti.astype(jnp.int32)), "topk indices mismatch"
    assert jnp.allclose(quant, r_quant, atol=1e-5, rtol=1e-5), "quantize mismatch"
    assert jnp.allclose(topk_v, r_tv, atol=1e-4, rtol=1e-4), "topk values mismatch"

    print("KERNEL_OK")
</pallas_src>

<mosaic_0001>
module attributes {stable_mosaic.version = 11 : i64} {
  func.func @_soho_vd_kernel(%arg0: i32, %arg1: memref<128x32xf32, #tpu.memory_space<vmem>>, %arg2: memref<128x32xf32, #tpu.memory_space<vmem>>, %arg3: memref<1x128xf32, #tpu.memory_space<vmem>>, %arg4: memref<128x32xf32, #tpu.memory_space<vmem>>, %arg5: memref<128x8xi32, #tpu.memory_space<vmem>>) attributes {dimension_semantics = [#tpu.dimension_semantics<parallel>], iteration_bounds = array<i64: 1>, scalar_prefetch = 0 : i64, scratch_operands = 0 : i64, tpu.core_type = #tpu.core_type<tc>, window_params = [{transform_indices = @transform_0, window_bounds = array<i64: 128, 32>}, {pipeline_mode = #tpu.pipeline_mode<synchronous>, transform_indices = @transform_1, window_bounds = array<i64: 128, 32>}, {pipeline_mode = #tpu.pipeline_mode<synchronous>, transform_indices = @transform_2, window_bounds = array<i64: 1, 128>}, {transform_indices = @transform_3, window_bounds = array<i64: 128, 32>}, {transform_indices = @transform_4, window_bounds = array<i64: 128, 8>}]} {
    %c0 = arith.constant 0 : index
    %c0_0 = arith.constant 0 : index
    %0 = vector.load %arg1[%c0, %c0_0] : memref<128x32xf32, #tpu.memory_space<vmem>>, vector<128x32xf32>
    %c0_1 = arith.constant 0 : index
    %c0_2 = arith.constant 0 : index
    %1 = vector.load %arg2[%c0_1, %c0_2] : memref<128x32xf32, #tpu.memory_space<vmem>>, vector<128x32xf32>
    %c0_3 = arith.constant 0 : index
    %c0_4 = arith.constant 0 : index
    %2 = vector.load %arg3[%c0_3, %c0_4] : memref<1x128xf32, #tpu.memory_space<vmem>>, vector<1x128xf32>
    %cst = arith.constant -2.000000e+00 : f32
    %3 = vector.broadcast %cst : f32 to vector<128x32xf32>
    %4 = arith.mulf %0, %3 : vector<128x32xf32>
    %cst_5 = arith.constant dense<0.000000e+00> : vector<128x128xf32>
    %5 = tpu.matmul %4, %1, %cst_5 {dimension_numbers = #tpu.dot_dimension_numbers<[1], [1], [0], [0], [0, 0, 1, 0], [], []>} : vector<128x32xf32>, vector<128x32xf32>, vector<128x128xf32> -> vector<128x128xf32>
    %6 = vector.broadcast %2 : vector<1x128xf32> to vector<128x128xf32>
    %7 = arith.addf %5, %6 : vector<128x128xf32>
    %8 = tpu.iota {dimensions = array<i32: 1>} : vector<1x128xi32>
    %c0_i32 = arith.constant 0 : i32
    %9 = vector.broadcast %c0_i32 : i32 to vector<1x128xi32>
    %10 = arith.addi %8, %9 : vector<1x128xi32>
    %cst_6 = arith.constant dense<0x7F800000> : vector<128xf32>
    %11 = vector.multi_reduction <minimumf>, %7, %cst_6 [1] : vector<128x128xf32> to vector<128xf32>
    %12 = vector.shape_cast %11 : vector<128xf32> to vector<128x1xf32>
    %13 = vector.broadcast %12 : vector<128x1xf32> to vector<128x128xf32>
    %14 = arith.cmpf oeq, %7, %13 : vector<128x128xf32>
    %c128_i32 = arith.constant 128 : i32
    %15 = vector.shape_cast %10 : vector<1x128xi32> to vector<1x128xi32>
    %16 = vector.broadcast %15 : vector<1x128xi32> to vector<128x128xi32>
    %17 = vector.broadcast %c128_i32 : i32 to vector<128x128xi32>
    %18 = arith.select %14, %16, %17 : vector<128x128xi1>, vector<128x128xi32>
    %cst_7 = arith.constant dense<2147483647> : vector<128xi32>
    %19 = vector.multi_reduction <minsi>, %18, %cst_7 [1] : vector<128x128xi32> to vector<128xi32>
    %20 = vector.shape_cast %19 : vector<128xi32> to vector<128x1xi32>
    %21 = vector.broadcast %10 : vector<1x128xi32> to vector<128x128xi32>
    %22 = vector.broadcast %20 : vector<128x1xi32> to vector<128x128xi32>
    %23 = arith.cmpi eq, %21, %22 : vector<128x128xi32>
    %cst_8 = arith.constant 0x7F800000 : f32
    %24 = vector.broadcast %cst_8 : f32 to vector<128x128xf32>
    %25 = arith.select %23, %24, %7 : vector<128x128xi1>, vector<128x128xf32>
    %cst_9 = arith.constant dense<0x7F800000> : vector<128xf32>
    %26 = vector.multi_reduction <minimumf>, %25, %cst_9 [1] : vector<128x128xf32> to vector<128xf32>
    %27 = vector.shape_cast %26 : vector<128xf32> to vector<128x1xf32>
    %28 = vector.broadcast %27 : vector<128x1xf32> to vector<128x128xf32>
    %29 = arith.cmpf oeq, %25, %28 : vector<128x128xf32>
    %c128_i32_10 = arith.constant 128 : i32
    %30 = vector.shape_cast %10 : vector<1x128xi32> to vector<1x128xi32>
    %31 = vector.broadcast %30 : vector<1x128xi32> to vector<128x128xi32>
    %32 = vector.broadcast %c128_i32_10 : i32 to vector<128x128xi32>
    %33 = arith.select %29, %31, %32 : vector<128x128xi1>, vector<128x128xi32>
    %cst_11 = arith.constant dense<2147483647> : vector<128xi32>
    %34 = vector.multi_reduction <minsi>, %33, %cst_11 [1] : vector<128x128xi32> to vector<128xi32>
    %35 = vector.shape_cast %34 : vector<128xi32> to vector<128x1xi32>
    %36 = vector.broadcast %10 : vector<1x128xi32> to vector<128x128xi32>
    %37 = vector.broadcast %35 : vector<128x1xi32> to vector<128x128xi32>
    %38 = arith.cmpi eq, %36, %37 : vector<128x128xi32>
    %cst_12 = arith.constant 0x7F800000 : f32
    %39 = vector.broadcast %cst_12 : f32 to vector<128x128xf32>
    %40 = arith.select %38, %39, %25 : vector<128x128xi1>, vector<128x128xf32>
    %cst_13 = arith.constant dense<0x7F800000> : vector<128xf32>
    %41 = vector.multi_reduction <minimumf>, %40, %cst_13 [1] : vector<128x128xf32> to vector<128xf32>
    %42 = vector.shape_cast %41 : vector<128xf32> to vector<128x1xf32>
    %43 = vector.broadcast %42 : vector<128x1xf32> to vector<128x128xf32>
    %44 = arith.cmpf oeq, %40, %43 : vector<128x128xf32>
    %c128_i32_14 = arith.constant 128 : i32
    %45 = vector.shape_cast %10 : vector<1x128xi32> to vector<1x128xi32>
    %46 = vector.broadcast %45 : vector<1x128xi32> to vector<128x128xi32>
    %47 = vector.broadcast %c128_i32_14 : i32 to vector<128x128xi32>
    %48 = arith.select %44, %46, %47 : vector<128x128xi1>, vector<128x128xi32>
    %cst_15 = arith.constant dense<2147483647> : vector<128xi32>
    %49 = vector.multi_reduction <minsi>, %48, %cst_15 [1] : vector<128x128xi32> to vector<128xi32>
    %50 = vector.shape_cast %49 : vector<128xi32> to vector<128x1xi32>
    %51 = vector.broadcast %10 : vector<1x128xi32> to vector<128x128xi32>
    %52 = vector.broadcast %50 : vector<128x1xi32> to vector<128x128xi32>
    %53 = arith.cmpi eq, %51, %52 : vector<128x128xi32>
    %cst_16 = arith.constant 0x7F800000 : f32
    %54 = vector.broadcast %cst_16 : f32 to vector<128x128xf32>
    %55 = arith.select %53, %54, %40 : vector<128x128xi1>, vector<128x128xf32>
    %cst_17 = arith.constant dense<0x7F800000> : vector<128xf32>
    %56 = vector.multi_reduction <minimumf>, %55, %cst_17 [1] : vector<128x128xf32> to vector<128xf32>
    %57 = vector.shape_cast %56 : vector<128xf32> to vector<128x1xf32>
    %58 = vector.broadcast %57 : vector<128x1xf32> to vector<128x128xf32>
    %59 = arith.cmpf oeq, %55, %58 : vector<128x128xf32>
    %c128_i32_18 = arith.constant 128 : i32
    %60 = vector.shape_cast %10 : vector<1x128xi32> to vector<1x128xi32>
    %61 = vector.broadcast %60 : vector<1x128xi32> to vector<128x128xi32>
    %62 = vector.broadcast %c128_i32_18 : i32 to vector<128x128xi32>
    %63 = arith.select %59, %61, %62 : vector<128x128xi1>, vector<128x128xi32>
    %cst_19 = arith.constant dense<2147483647> : vector<128xi32>
    %64 = vector.multi_reduction <minsi>, %63, %cst_19 [1] : vector<128x128xi32> to vector<128xi32>
    %65 = vector.shape_cast %64 : vector<128xi32> to vector<128x1xi32>
    %66 = arith.extui %23 : vector<128x128xi1> to vector<128x128xi32>
    %67 = arith.sitofp %66 : vector<128x128xi32> to vector<128x128xf32>
    %cst_20 = arith.constant dense<0.000000e+00> : vector<128x32xf32>
    %68 = tpu.matmul %67, %1, %cst_20 {dimension_numbers = #tpu.dot_dimension_numbers<[1], [0], [0], [1], [0, 0, 1, 1], [], []>} : vector<128x128xf32>, vector<128x32xf32>, vector<128x32xf32> -> vector<128x32xf32>
    %c0_21 = arith.constant 0 : index
    %c0_22 = arith.constant 0 : index
    %69 = vector.load %arg4[%c0_21, %c0_22] : memref<128x32xf32, #tpu.memory_space<vmem>>, vector<128x32xf32>
    tpu.vector_store %arg4[%c0_21, %c0_22], %68 {strides = array<i32>} : memref<128x32xf32, #tpu.memory_space<vmem>>, vector<128x32xf32>,
    %70 = arith.mulf %0, %0 : vector<128x32xf32>
    %cst_23 = arith.constant dense<0.000000e+00> : vector<128xf32>
    %71 = vector.multi_reduction <add>, %70, %cst_23 [1] : vector<128x32xf32> to vector<128xf32>
    %72 = vector.shape_cast %71 : vector<128xf32> to vector<128x1xf32>
    %73 = tpu.concatenate %27, %42, %57 in 1 : vector<128x1xf32>, vector<128x1xf32>, vector<128x1xf32> -> vector<128x3xf32>
    %74 = vector.broadcast %72 : vector<128x1xf32> to vector<128x3xf32>
    %75 = arith.addf %73, %74 : vector<128x3xf32>
    %76 = arith.mulf %75, %75 : vector<128x3xf32>
    %cst_24 = arith.constant dense<0.000000e+00> : vector<128xf32>
    %77 = vector.multi_reduction <add>, %76, %cst_24 [1] : vector<128x3xf32> to vector<128xf32>
    %78 = vector.shape_cast %77 : vector<128xf32> to vector<128x1xf32>
    %79 = math.sqrt %78 : vector<128x1xf32>
    %cst_25 = arith.constant 9.99999996E-13 : f32
    %80 = vector.broadcast %cst_25 : f32 to vector<128x1xf32>
    %81 = arith.maximumf %79, %80 : vector<128x1xf32>
    %82 = vector.broadcast %81 : vector<128x1xf32> to vector<128x3xf32>
    %83 = arith.divf %75, %82 : vector<128x3xf32>
    %cst_26 = arith.constant 9.99999974E-5 : f32
    %84 = vector.broadcast %cst_26 : f32 to vector<128x3xf32>
    %85 = arith.addf %83, %84 : vector<128x3xf32>
    %cst_27 = arith.constant 1.000000e+00 : f32
    %86 = vector.broadcast %cst_27 : f32 to vector<128x3xf32>
    %87 = arith.divf %86, %85 : vector<128x3xf32>
    %cst_28 = arith.constant dense<0xFF800000> : vector<128xf32>
    %88 = vector.multi_reduction <maximumf>, %87, %cst_28 [1] : vector<128x3xf32> to vector<128xf32>
    %89 = vector.shape_cast %88 : vector<128xf32> to vector<128x1xf32>
    %90 = vector.broadcast %89 : vector<128x1xf32> to vector<128x3xf32>
    %91 = arith.subf %87, %90 : vector<128x3xf32>
    %92 = math.exp %91 : vector<128x3xf32>
    %cst_29 = arith.constant dense<0.000000e+00> : vector<128xf32>
    %93 = vector.multi_reduction <add>, %92, %cst_29 [1] : vector<128x3xf32> to vector<128xf32>
    %94 = vector.shape_cast %93 : vector<128xf32> to vector<128x1xf32>
    %95 = vector.broadcast %94 : vector<128x1xf32> to vector<128x3xf32>
    %96 = arith.divf %92, %95 : vector<128x3xf32>
    %97 = tpu.bitcast %96 : vector<128x3xf32> -> vector<128x3xi32>
    %c0_i32_30 = arith.constant 0 : i32
    %98 = vector.broadcast %c0_i32_30 : i32 to vector<128x1xi32>
    %99 = tpu.concatenate %20, %35, %50, %65, %97, %98 in 1 : vector<128x1xi32>, vector<128x1xi32>, vector<128x1xi32>, vector<128x1xi32>, vector<128x3xi32>, vector<128x1xi32> -> vector<128x8xi32>
    %c0_31 = arith.constant 0 : index
    %c0_32 = arith.constant 0 : index
    %100 = vector.load %arg5[%c0_31, %c0_32] : memref<128x8xi32, #tpu.memory_space<vmem>>, vector<128x8xi32>
    tpu.vector_store %arg5[%c0_31, %c0_32], %99 {strides = array<i32>} : memref<128x8xi32, #tpu.memory_space<vmem>>, vector<128x8xi32>,
    return
  }
  func.func @transform_0(%arg0: i32) -> (i32, i32) {
    %c0_i32 = arith.constant 0 : i32
    %c0_i32_0 = arith.constant 0 : i32
    return %arg0, %c0_i32 : i32, i32
  }
  func.func @transform_1(%arg0: i32) -> (i32, i32) {
    %c0_i32 = arith.constant 0 : i32
    %c0_i32_0 = arith.constant 0 : i32
    %c0_i32_1 = arith.constant 0 : i32
    return %c0_i32, %c0_i32_0 : i32, i32
  }
  func.func @transform_2(%arg0: i32) -> (i32, i32) {
    %c0_i32 = arith.constant 0 : i32
    %c0_i32_0 = arith.constant 0 : i32
    %c0_i32_1 = arith.constant 0 : i32
    return %c0_i32, %c0_i32_0 : i32, i32
  }
  func.func @transform_3(%arg0: i32) -> (i32, i32) {
    %c0_i32 = arith.constant 0 : i32
    %c0_i32_0 = arith.constant 0 : i32
    return %arg0, %c0_i32 : i32, i32
  }
  func.func @transform_4(%arg0: i32) -> (i32, i32) {
    %c0_i32 = arith.constant 0 : i32
    %c0_i32_0 = arith.constant 0 : i32
    return %arg0, %c0_i32 : i32, i32
  }
}

</mosaic_0001>

<llo_original>
// kernel: soho_pre_vd_forward.1
$region0: #{soho_pre_vd_forward.1}
  #allocation0 [shape = 'u32[]', space=smem, size = 0x4, offset = 0x4, fixed_abs, tag = 'smem constant byte address 0x4 - core index']
  #allocation1 [shape = 'u32[144,128]{1,0:T(1,128)}', space=vmem, size = 0x12000, scoped, tag = 'internal scratch']
  %s0 = inlined_call_operand.vmem [shape: f32[128,32], index: 0, kind: input, shape index: {}]
  %s1 = inlined_call_operand.vmem [shape: f32[128,32], index: 1, kind: input, shape index: {}]
  %s2 = inlined_call_operand.vmem [shape: f32[1,128], index: 2, kind: input, shape index: {}]
  %s3 = inlined_call_operand.vmem [shape: f32[128,32], index: 3, kind: output, shape index: {0}]
  %s4 = inlined_call_operand.vmem [shape: s32[128,8], index: 4, kind: output, shape index: {1}]
  %5 = xla_tuple %s3, %s4
  %s6 = sld [smem:[#allocation0]]
  $region30: #{soho_pre_vd_forward.1} parent=0
    _
  %s8 = ssub.s32 1, %s6
  %s9 = scalar_select 0, %s8, %s6
  // Predicated region
  $region2: #{soho_pre_vd_forward.1} parent=0 // pred_check
    _
  $region3: #{soho_pre_vd_forward.1} parent=0 // pred_check_branch
    %11 = sbr.rel (0) target = $region5
  $region4: #{soho_pre_vd_forward.1} parent=0 // pred_region
    _
  $region5: #{soho_pre_vd_forward.1} parent=0 // pred_fallthru
    _
  // Predicated region
  $region6: #{soho_pre_vd_forward.1} parent=0 // pred_check
    _
  $region7: #{soho_pre_vd_forward.1} parent=0 // pred_check_branch
    %13 = sbr.rel (0) target = $region9
  $region8: #{soho_pre_vd_forward.1} parent=0 // pred_region
    _
  $region9: #{soho_pre_vd_forward.1} parent=0 // pred_fallthru
    _
  // Predicated region
  $region10: #{soho_pre_vd_forward.1} parent=0 // pred_check
    _
  $region11: #{soho_pre_vd_forward.1} parent=0 // pred_check_branch
    %15 = sbr.rel (0) target = $region13
  $region12: #{soho_pre_vd_forward.1} parent=0 // pred_region
    _
  $region13: #{soho_pre_vd_forward.1} parent=0 // pred_fallthru
    _
  %v16 = vld [vmem:[%s0] sm:$0xff]
  %v17 = vld [vmem:[%s0 + $0x8] sm:$0xff]
  %v18 = vld [vmem:[%s0 + $0x10] sm:$0xff]
  %v19 = vld [vmem:[%s0 + $0x18] sm:$0xff]
  %v20 = vld [vmem:[%s0 + $0x20] sm:$0xff]
  %v21 = vld [vmem:[%s0 + $0x28] sm:$0xff]
  %v22 = vld [vmem:[%s0 + $0x30] sm:$0xff]
  %v23 = vld [vmem:[%s0 + $0x38] sm:$0xff]
  %v24 = vld [vmem:[%s0 + $0x40] sm:$0xff]
  %v25 = vld [vmem:[%s0 + $0x48] sm:$0xff]
  %v26 = vld [vmem:[%s0 + $0x50] sm:$0xff]
  %v27 = vld [vmem:[%s0 + $0x58] sm:$0xff]
  %v28 = vld [vmem:[%s0 + $0x60] sm:$0xff]
  %v29 = vld [vmem:[%s0 + $0x68] sm:$0xff]
  %v30 = vld [vmem:[%s0 + $0x70] sm:$0xff]
  %v31 = vld [vmem:[%s0 + $0x78] sm:$0xff]
  %v32 = vld [vmem:[%s1] sm:$0xff]
  %v33 = vld [vmem:[%s1 + $0x8] sm:$0xff]
  %v34 = vld [vmem:[%s1 + $0x10] sm:$0xff]
  %v35 = vld [vmem:[%s1 + $0x18] sm:$0xff]
  %v36 = vld [vmem:[%s1 + $0x20] sm:$0xff]
  %v37 = vld [vmem:[%s1 + $0x28] sm:$0xff]
  %v38 = vld [vmem:[%s1 + $0x30] sm:$0xff]
  %v39 = vld [vmem:[%s1 + $0x38] sm:$0xff]
  %v40 = vld [vmem:[%s1 + $0x40] sm:$0xff]
  %v41 = vld [vmem:[%s1 + $0x48] sm:$0xff]
  %v42 = vld [vmem:[%s1 + $0x50] sm:$0xff]
  %v43 = vld [vmem:[%s1 + $0x58] sm:$0xff]
  %v44 = vld [vmem:[%s1 + $0x60] sm:$0xff]
  %v45 = vld [vmem:[%s1 + $0x68] sm:$0xff]
  %v46 = vld [vmem:[%s1 + $0x70] sm:$0xff]
  %v47 = vld [vmem:[%s1 + $0x78] sm:$0xff]
  %v48 = vld [vmem:[%s2] sm:$0x1]
  %v49 = vmul.f32 %v16, -2.0
  %v50 = vmul.f32 %v17, -2.0
  %v51 = vmul.f32 %v18, -2.0
  %v52 = vmul.f32 %v19, -2.0
  %v53 = vmul.f32 %v20, -2.0
  %v54 = vmul.f32 %v21, -2.0
  %v55 = vmul.f32 %v22, -2.0
  %v56 = vmul.f32 %v23, -2.0
  %v57 = vmul.f32 %v24, -2.0
  %v58 = vmul.f32 %v25, -2.0
  %v59 = vmul.f32 %v26, -2.0
  %v60 = vmul.f32 %v27, -2.0
  %v61 = vmul.f32 %v28, -2.0
  %v62 = vmul.f32 %v29, -2.0
  %v63 = vmul.f32 %v30, -2.0
  %v64 = vmul.f32 %v31, -2.0
  %v66 = vlaneseq
  %v67 = vshrl.u32 %v66, 7
  %v68 = vsub.s32 0, %v67
  %v69 = vrot.slane %v48, %v68
  %vm71 = vcmask 261120
  %v73 = vsel %vm71, %v49, 0
  %v76 = vsel %vm71, %v50, 0
  %v79 = vsel %vm71, %v51, 0
  %v82 = vsel %vm71, %v52, 0
  %v85 = vsel %vm71, %v53, 0
  %v88 = vsel %vm71, %v54, 0
  %v91 = vsel %vm71, %v55, 0
  %v94 = vsel %vm71, %v56, 0
  %v97 = vsel %vm71, %v57, 0
  %v100 = vsel %vm71, %v58, 0
  %v103 = vsel %vm71, %v59, 0
  %v106 = vsel %vm71, %v60, 0
  %v109 = vsel %vm71, %v61, 0
  %v112 = vsel %vm71, %v62, 0
  %v115 = vsel %vm71, %v63, 0
  %v118 = vsel %vm71, %v64, 0
  %v121 = vsel %vm71, %v32, 0
  %v124 = vsel %vm71, %v33, 0
  %v127 = vsel %vm71, %v34, 0
  %v130 = vsel %vm71, %v35, 0
  %v133 = vsel %vm71, %v36, 0
  %v136 = vsel %vm71, %v37, 0
  %v139 = vsel %vm71, %v38, 0
  %v142 = vsel %vm71, %v39, 0
  %v145 = vsel %vm71, %v40, 0
  %v148 = vsel %vm71, %v41, 0
  %v151 = vsel %vm71, %v42, 0
  %v154 = vsel %vm71, %v43, 0
  %v157 = vsel %vm71, %v44, 0
  %v160 = vsel %vm71, %v45, 0
  %v163 = vsel %vm71, %v46, 0
  %v166 = vsel %vm71, %v47, 0
  %168 = vmatprep.subr.mxu0 0.0
  %169 = vmatpush1.xpose.msra.mxu0 %v121
  %170 = vmatprep.subr.mxu0 0.0
  %171 = vmatpush1.xpose.msra.mxu0 %v124
  %172 = vmatprep.subr.mxu0 0.0
  %173 = vmatpush1.xpose.msra.mxu0 %v127
  %174 = vmatprep.subr.mxu0 0.0
  %175 = vmatpush1.xpose.msra.mxu0 %v130
  %176 = vmatprep.subr.mxu0 0.0
  %177 = vmatpush1.xpose.msra.mxu0 %v133
  %178 = vmatprep.subr.mxu0 0.0
  %179 = vmatpush1.xpose.msra.mxu0 %v136
  %180 = vmatprep.subr.mxu0 0.0
  %181 = vmatpush1.xpose.msra.mxu0 %v139
  %182 = vmatprep.subr.mxu0 0.0
  %183 = vmatpush1.xpose.msra.mxu0 %v142
  %184 = vmatprep.subr.mxu0 0.0
  %185 = vmatpush1.xpose.msra.mxu0 %v145
  %186 = vmatprep.subr.mxu0 0.0
  %187 = vmatpush1.xpose.msra.mxu0 %v148
  %188 = vmatprep.subr.mxu0 0.0
  %189 = vmatpush1.xpose.msra.mxu0 %v151
  %190 = vmatprep.subr.mxu0 0.0
  %191 = vmatpush1.xpose.msra.mxu0 %v154
  %192 = vmatprep.subr.mxu0 0.0
  %193 = vmatpush1.xpose.msra.mxu0 %v157
  %194 = vmatprep.subr.mxu0 0.0
  %195 = vmatpush1.xpose.msra.mxu0 %v160
  %196 = vmatprep.subr.mxu0 0.0
  %197 = vmatpush1.xpose.msra.mxu0 %v163
  %198 = vmatprep.subr.mxu0 0.0
  %199 = vmatpush1.xpose.msra.mxu0 %v166
  %200 = vmatprep.subr.mxu0 0.0
  %201 = vmatpush1.xpose.msra.mxu0 0.0
  %202 = vmatprep.subr.mxu0 0.0
  %203 = vmatpush1.xpose.msra.mxu0 0.0
  %204 = vmatprep.subr.mxu0 0.0
  %205 = vmatpush1.xpose.msra.mxu0 0.0
  %206 = vmatprep.subr.mxu0 0.0
  %207 = vmatpush1.xpose.msra.mxu0 0.0
  %208 = vmatprep.subr.mxu0 0.0
  %209 = vmatpush1.xpose.msra.mxu0 0.0
  %210 = vmatprep.subr.mxu0 0.0
  %211 = vmatpush1.xpose.msra.mxu0 0.0
  %212 = vmatprep.subr.mxu0 0.0
  %213 = vmatpush1.xpose.msra.mxu0 0.0
  %214 = vmatprep.subr.mxu0 0.0
  %215 = vmatpush1.xpose.msra.mxu0 0.0
  %216 = vmatprep.subr.mxu0 0.0
  %217 = vmatpush1.xpose.msra.mxu0 0.0
  %218 = vmatprep.subr.mxu0 0.0
  %219 = vmatpush1.xpose.msra.mxu0 0.0
  %220 = vmatprep.subr.mxu0 0.0
  %221 = vmatpush1.xpose.msra.mxu0 0.0
  %222 = vmatprep.subr.mxu0 0.0
  %223 = vmatpush1.xpose.msra.mxu0 0.0
  %224 = vmatprep.subr.mxu0 0.0
  %225 = vmatpush1.xpose.msra.mxu0 0.0
  %226 = vmatprep.subr.mxu0 0.0
  %227 = vmatpush1.xpose.msra.mxu0 0.0
  %228 = vmatprep.subr.mxu0 0.0
  %229 = vmatpush1.xpose.msra.mxu0 0.0
  %230 = vmatprep.subr.mxu0 0.0
  %231 = vmatpush1.xpose.msra.mxu0 0.0
  %232 = vmatprep.mubr.f32.mxu0 0.0
  %233 = vmatmul.mubr.f32.gmra.mrb[0].mxu0 %v73
  %v234 = vpop.f32.mrb[0].mxu0
  %v235 = vadd.f32 %v69, %v234
  %v236 = vpop.f32.mrb[0].mxu0
  %237 = vmatprep.mubr.f32.mxu0 0.0
  %238 = vmatmul.mubr.f32.gmra.mrb[0].mxu0 %v76
  %v239 = vpop.f32.mrb[0].mxu0
  %v240 = vadd.f32 %v69, %v239
  %v241 = vpop.f32.mrb[0].mxu0
  %242 = vmatprep.mubr.f32.mxu0 0.0
  %243 = vmatmul.mubr.f32.gmra.mrb[0].mxu0 %v79
  %v244 = vpop.f32.mrb[0].mxu0
  %v245 = vadd.f32 %v69, %v244
  %v246 = vpop.f32.mrb[0].mxu0
  %247 = vmatprep.mubr.f32.mxu0 0.0
  %248 = vmatmul.mubr.f32.gmra.mrb[0].mxu0 %v82
  %v249 = vpop.f32.mrb[0].mxu0
  %v250 = vadd.f32 %v69, %v249
  %v251 = vpop.f32.mrb[0].mxu0
  %252 = vmatprep.mubr.f32.mxu0 0.0
  %253 = vmatmul.mubr.f32.gmra.mrb[0].mxu0 %v85
  %v254 = vpop.f32.mrb[0].mxu0
  %v255 = vadd.f32 %v69, %v254
  %v256 = vpop.f32.mrb[0].mxu0
  %257 = vmatprep.mubr.f32.mxu0 0.0
  %258 = vmatmul.mubr.f32.gmra.mrb[0].mxu0 %v88
  %v259 = vpop.f32.mrb[0].mxu0
  %v260 = vadd.f32 %v69, %v259
  %v261 = vpop.f32.mrb[0].mxu0
  %262 = vmatprep.mubr.f32.mxu0 0.0
  %263 = vmatmul.mubr.f32.gmra.mrb[0].mxu0 %v91
  %v264 = vpop.f32.mrb[0].mxu0
  %v265 = vadd.f32 %v69, %v264
  %v266 = vpop.f32.mrb[0].mxu0
  %267 = vmatprep.mubr.f32.mxu0 0.0
  %268 = vmatmul.mubr.f32.gmra.mrb[0].mxu0 %v94
  %v269 = vpop.f32.mrb[0].mxu0
  %v270 = vadd.f32 %v69, %v269
  %v271 = vpop.f32.mrb[0].mxu0
  %272 = vmatprep.mubr.f32.mxu0 0.0
  %273 = vmatmul.mubr.f32.gmra.mrb[0].mxu0 %v97
  %v274 = vpop.f32.mrb[0].mxu0
  %v275 = vadd.f32 %v69, %v274
  %v276 = vpop.f32.mrb[0].mxu0
  %277 = vmatprep.mubr.f32.mxu0 0.0
  %278 = vmatmul.mubr.f32.gmra.mrb[0].mxu0 %v100
  %v279 = vpop.f32.mrb[0].mxu0
  %v280 = vadd.f32 %v69, %v279
  %v281 = vpop.f32.mrb[0].mxu0
  %282 = vmatprep.mubr.f32.mxu0 0.0
  %283 = vmatmul.mubr.f32.gmra.mrb[0].mxu0 %v103
  %v284 = vpop.f32.mrb[0].mxu0
  %v285 = vadd.f32 %v69, %v284
  %v286 = vpop.f32.mrb[0].mxu0
  %287 = vmatprep.mubr.f32.mxu0 0.0
  %288 = vmatmul.mubr.f32.gmra.mrb[0].mxu0 %v106
  %v289 = vpop.f32.mrb[0].mxu0
  %v290 = vadd.f32 %v69, %v289
  %v291 = vpop.f32.mrb[0].mxu0
  %292 = vmatprep.mubr.f32.mxu0 0.0
  %293 = vmatmul.mubr.f32.gmra.mrb[0].mxu0 %v109
  %v294 = vpop.f32.mrb[0].mxu0
  %v295 = vadd.f32 %v69, %v294
  %v296 = vpop.f32.mrb[0].mxu0
  %297 = vmatprep.mubr.f32.mxu0 0.0
  %298 = vmatmul.mubr.f32.gmra.mrb[0].mxu0 %v112
  %v299 = vpop.f32.mrb[0].mxu0
  %v300 = vadd.f32 %v69, %v299
  %v301 = vpop.f32.mrb[0].mxu0
  %302 = vmatprep.mubr.f32.mxu0 0.0
  %303 = vmatmul.mubr.f32.gmra.mrb[0].mxu0 %v115
  %v304 = vpop.f32.mrb[0].mxu0
  %v305 = vadd.f32 %v69, %v304
  %v306 = vpop.f32.mrb[0].mxu0
  %307 = vmatprep.mubr.f32.mxu0 0.0
  %308 = vmatmul.mubr.f32.gmra.mrb[0].mxu0 %v118
  %v309 = vpop.f32.mrb[0].mxu0
  %v310 = vadd.f32 %v69, %v309
  %v311 = vpop.f32.mrb[0].mxu0
  %312 = vdwg.mxu0
  %v313 = vlaneseq
  %v314 = vand.u32 %v313, 127
  %315 = vmin.xlane.f32.xlu0 %v235
  %v316 = vpop.xlane.xlu0 %315
  %317 = vmin.xlane.f32.xlu0 %v240
  %v318 = vpop.xlane.xlu0 %317
  %319 = vmin.xlane.f32.xlu0 %v245
  %v320 = vpop.xlane.xlu0 %319
  %321 = vmin.xlane.f32.xlu0 %v250
  %v322 = vpop.xlane.xlu0 %321
  %323 = vmin.xlane.f32.xlu0 %v255
  %v324 = vpop.xlane.xlu0 %323
  %325 = vmin.xlane.f32.xlu0 %v260
  %v326 = vpop.xlane.xlu0 %325
  %327 = vmin.xlane.f32.xlu0 %v265
  %v328 = vpop.xlane.xlu0 %327
  %329 = vmin.xlane.f32.xlu0 %v270
  %v330 = vpop.xlane.xlu0 %329
  %331 = vmin.xlane.f32.xlu0 %v275
  %v332 = vpop.xlane.xlu0 %331
  %333 = vmin.xlane.f32.xlu0 %v280
  %v334 = vpop.xlane.xlu0 %333
  %335 = vmin.xlane.f32.xlu0 %v285
  %v336 = vpop.xlane.xlu0 %335
  %337 = vmin.xlane.f32.xlu0 %v290
  %v338 = vpop.xlane.xlu0 %337
  %339 = vmin.xlane.f32.xlu0 %v295
  %v340 = vpop.xlane.xlu0 %339
  %341 = vmin.xlane.f32.xlu0 %v300
  %v342 = vpop.xlane.xlu0 %341
  %343 = vmin.xlane.f32.xlu0 %v305
  %v344 = vpop.xlane.xlu0 %343
  %345 = vmin.xlane.f32.xlu0 %v310
  %v346 = vpop.xlane.xlu0 %345
  %vm347 = vcmp.eq.f32.partialorder %v235, %v316
  %vm348 = vcmp.eq.f32.partialorder %v240, %v318
  %vm349 = vcmp.eq.f32.partialorder %v245, %v320
  %vm350 = vcmp.eq.f32.partialorder %v250, %v322
  %vm351 = vcmp.eq.f32.partialorder %v255, %v324
  %vm352 = vcmp.eq.f32.partialorder %v260, %v326
  %vm353 = vcmp.eq.f32.partialorder %v265, %v328
  %vm354 = vcmp.eq.f32.partialorder %v270, %v330
  %vm355 = vcmp.eq.f32.partialorder %v275, %v332
  %vm356 = vcmp.eq.f32.partialorder %v280, %v334
  %vm357 = vcmp.eq.f32.partialorder %v285, %v336
  %vm358 = vcmp.eq.f32.partialorder %v290, %v338
  %vm359 = vcmp.eq.f32.partialorder %v295, %v340
  %vm360 = vcmp.eq.f32.partialorder %v300, %v342
  %vm361 = vcmp.eq.f32.partialorder %v305, %v344
  %vm362 = vcmp.eq.f32.partialorder %v310, %v346
  %v363 = vsel %vm347, %v314, 128
  %v364 = vsel %vm348, %v314, 128
  %v365 = vsel %vm349, %v314, 128
  %v366 = vsel %vm350, %v314, 128
  %v367 = vsel %vm351, %v314, 128
  %v368 = vsel %vm352, %v314, 128
  %v369 = vsel %vm353, %v314, 128
  %v370 = vsel %vm354, %v314, 128
  %v371 = vsel %vm355, %v314, 128
  %v372 = vsel %vm356, %v314, 128
  %v373 = vsel %vm357, %v314, 128
  %v374 = vsel %vm358, %v314, 128
  %v375 = vsel %vm359, %v314, 128
  %v376 = vsel %vm360, %v314, 128
  %v377 = vsel %vm361, %v314, 128
  %v378 = vsel %vm362, %v314, 128
  %v379 = vand.u32 %v363, 65535
  %v380 = vshra.s32 %v363, 16
  %v381 = vcvt.s32.f32 %v379
  %v382 = vcvt.s32.f32 %v380
  %383 = vmin.xlane.f32.xlu0 %v382
  %v384 = vpop.xlane.xlu0 %383
  %vm385 = vcmp.eq.f32.partialorder %v382, %v384
  %v386 = vsel %vm385, %v381, inf
  %387 = vmin.xlane.f32.xlu0 %v386
  %v388 = vpop.xlane.xlu0 %387
  %v389 = vcvt.f32.s32 %v388
  %v390 = vcvt.f32.s32 %v384
  %v391 = vshll.u32 %v390, 16
  %v392 = vadd.s32 %v391, %v389
  %v393 = vand.u32 %v364, 65535
  %v394 = vshra.s32 %v364, 16
  %v395 = vcvt.s32.f32 %v393
  %v396 = vcvt.s32.f32 %v394
  %397 = vmin.xlane.f32.xlu0 %v396
  %v398 = vpop.xlane.xlu0 %397
  %vm399 = vcmp.eq.f32.partialorder %v396, %v398
  %v400 = vsel %vm399, %v395, inf
  %401 = vmin.xlane.f32.xlu0 %v400
  %v402 = vpop.xlane.xlu0 %401
  %v403 = vcvt.f32.s32 %v402
  %v404 = vcvt.f32.s32 %v398
  %v405 = vshll.u32 %v404, 16
  %v406 = vadd.s32 %v405, %v403
  %v407 = vand.u32 %v365, 65535
  %v408 = vshra.s32 %v365, 16
  %v409 = vcvt.s32.f32 %v407
  %v410 = vcvt.s32.f32 %v408
  %411 = vmin.xlane.f32.xlu0 %v410
  %v412 = vpop.xlane.xlu0 %411
  %vm413 = vcmp.eq.f32.partialorder %v410, %v412
  %v414 = vsel %vm413, %v409, inf
  %415 = vmin.xlane.f32.xlu0 %v414
  %v416 = vpop.xlane.xlu0 %415
  %v417 = vcvt.f32.s32 %v416
  %v418 = vcvt.f32.s32 %v412
  %v419 = vshll.u32 %v418, 16
  %v420 = vadd.s32 %v419, %v417
  %v421 = vand.u32 %v366, 65535
  %v422 = vshra.s32 %v366, 16
  %v423 = vcvt.s32.f32 %v421
  %v424 = vcvt.s32.f32 %v422
  %425 = vmin.xlane.f32.xlu0 %v424
  %v426 = vpop.xlane.xlu0 %425
  %vm427 = vcmp.eq.f32.partialorder %v424, %v426
  %v428 = vsel %vm427, %v423, inf
  %429 = vmin.xlane.f32.xlu0 %v428
  %v430 = vpop.xlane.xlu0 %429
  %v431 = vcvt.f32.s32 %v430
  %v432 = vcvt.f32.s32 %v426
  %v433 = vshll.u32 %v432, 16
  %v434 = vadd.s32 %v433, %v431
  %v435 = vand.u32 %v367, 65535
  %v436 = vshra.s32 %v367, 16
  %v437 = vcvt.s32.f32 %v435
  %v438 = vcvt.s32.f32 %v436
  %439 = vmin.xlane.f32.xlu0 %v438
  %v440 = vpop.xlane.xlu0 %439
  %vm441 = vcmp.eq.f32.partialorder %v438, %v440
  %v442 = vsel %vm441, %v437, inf
  %443 = vmin.xlane.f32.xlu0 %v442
  %v444 = vpop.xlane.xlu0 %443
  %v445 = vcvt.f32.s32 %v444
  %v446 = vcvt.f32.s32 %v440
  %v447 = vshll.u32 %v446, 16
  %v448 = vadd.s32 %v447, %v445
  %v449 = vand.u32 %v368, 65535
  %v450 = vshra.s32 %v368, 16
  %v451 = vcvt.s32.f32 %v449
  %v452 = vcvt.s32.f32 %v450
  %453 = vmin.xlane.f32.xlu0 %v452
  %v454 = vpop.xlane.xlu0 %453
  %vm455 = vcmp.eq.f32.partialorder %v452, %v454
  %v456 = vsel %vm455, %v451, inf
  %457 = vmin.xlane.f32.xlu0 %v456
  %v458 = vpop.xlane.xlu0 %457
  %v459 = vcvt.f32.s32 %v458
  %v460 = vcvt.f32.s32 %v454
  %v461 = vshll.u32 %v460, 16
  %v462 = vadd.s32 %v461, %v459
  %v463 = vand.u32 %v369, 65535
  %v464 = vshra.s32 %v369, 16
  %v465 = vcvt.s32.f32 %v463
  %v466 = vcvt.s32.f32 %v464
  %467 = vmin.xlane.f32.xlu0 %v466
  %v468 = vpop.xlane.xlu0 %467
  %vm469 = vcmp.eq.f32.partialorder %v466, %v468
  %v470 = vsel %vm469, %v465, inf
  %471 = vmin.xlane.f32.xlu0 %v470
  %v472 = vpop.xlane.xlu0 %471
  %v473 = vcvt.f32.s32 %v472
  %v474 = vcvt.f32.s32 %v468
  %v475 = vshll.u32 %v474, 16
  %v476 = vadd.s32 %v475, %v473
  %v477 = vand.u32 %v370, 65535
  %v478 = vshra.s32 %v370, 16
  %v479 = vcvt.s32.f32 %v477
  %v480 = vcvt.s32.f32 %v478
  %481 = vmin.xlane.f32.xlu0 %v480
  %v482 = vpop.xlane.xlu0 %481
  %vm483 = vcmp.eq.f32.partialorder %v480, %v482
  %v484 = vsel %vm483, %v479, inf
  %485 = vmin.xlane.f32.xlu0 %v484
  %v486 = vpop.xlane.xlu0 %485
  %v487 = vcvt.f32.s32 %v486
  %v488 = vcvt.f32.s32 %v482
  %v489 = vshll.u32 %v488, 16
  %v490 = vadd.s32 %v489, %v487
  %v491 = vand.u32 %v371, 65535
  %v492 = vshra.s32 %v371, 16
  %v493 = vcvt.s32.f32 %v491
  %v494 = vcvt.s32.f32 %v492
  %495 = vmin.xlane.f32.xlu0 %v494
  %v496 = vpop.xlane.xlu0 %495
  %vm497 = vcmp.eq.f32.partialorder %v494, %v496
  %v498 = vsel %vm497, %v493, inf
  %499 = vmin.xlane.f32.xlu0 %v498
  %v500 = vpop.xlane.xlu0 %499
  %v501 = vcvt.f32.s32 %v500
  %v502 = vcvt.f32.s32 %v496
  %v503 = vshll.u32 %v502, 16
  %v504 = vadd.s32 %v503, %v501
  %v505 = vand.u32 %v372, 65535
  %v506 = vshra.s32 %v372, 16
  %v507 = vcvt.s32.f32 %v505
  %v508 = vcvt.s32.f32 %v506
  %509 = vmin.xlane.f32.xlu0 %v508
  %v510 = vpop.xlane.xlu0 %509
  %vm511 = vcmp.eq.f32.partialorder %v508, %v510
  %v512 = vsel %vm511, %v507, inf
  %513 = vmin.xlane.f32.xlu0 %v512
  %v514 = vpop.xlane.xlu0 %513
  %v515 = vcvt.f32.s32 %v514
  %v516 = vcvt.f32.s32 %v510
  %v517 = vshll.u32 %v516, 16
  %v518 = vadd.s32 %v517, %v515
  %v519 = vand.u32 %v373, 65535
  %v520 = vshra.s32 %v373, 16
  %v521 = vcvt.s32.f32 %v519
  %v522 = vcvt.s32.f32 %v520
  %523 = vmin.xlane.f32.xlu0 %v522
  %v524 = vpop.xlane.xlu0 %523
  %vm525 = vcmp.eq.f32.partialorder %v522, %v524
  %v526 = vsel %vm525, %v521, inf
  %527 = vmin.xlane.f32.xlu0 %v526
  %v528 = vpop.xlane.xlu0 %527
  %v529 = vcvt.f32.s32 %v528
  %v530 = vcvt.f32.s32 %v524
  %v531 = vshll.u32 %v530, 16
  %v532 = vadd.s32 %v531, %v529
  %v533 = vand.u32 %v374, 65535
  %v534 = vshra.s32 %v374, 16
  %v535 = vcvt.s32.f32 %v533
  %v536 = vcvt.s32.f32 %v534
  %537 = vmin.xlane.f32.xlu0 %v536
  %v538 = vpop.xlane.xlu0 %537
  %vm539 = vcmp.eq.f32.partialorder %v536, %v538
  %v540 = vsel %vm539, %v535, inf
  %541 = vmin.xlane.f32.xlu0 %v540
  %v542 = vpop.xlane.xlu0 %541
  %v543 = vcvt.f32.s32 %v542
  %v544 = vcvt.f32.s32 %v538
  %v545 = vshll.u32 %v544, 16
  %v546 = vadd.s32 %v545, %v543
  %v547 = vand.u32 %v375, 65535
  %v548 = vshra.s32 %v375, 16
  %v549 = vcvt.s32.f32 %v547
  %v550 = vcvt.s32.f32 %v548
  %551 = vmin.xlane.f32.xlu0 %v550
  %v552 = vpop.xlane.xlu0 %551
  %vm553 = vcmp.eq.f32.partialorder %v550, %v552
  %v554 = vsel %vm553, %v549, inf
  %555 = vmin.xlane.f32.xlu0 %v554
  %v556 = vpop.xlane.xlu0 %555
  %v557 = vcvt.f32.s32 %v556
  %v558 = vcvt.f32.s32 %v552
  %v559 = vshll.u32 %v558, 16
  %v560 = vadd.s32 %v559, %v557
  %v561 = vand.u32 %v376, 65535
  %v562 = vshra.s32 %v376, 16
  %v563 = vcvt.s32.f32 %v561
  %v564 = vcvt.s32.f32 %v562
  %565 = vmin.xlane.f32.xlu0 %v564
  %v566 = vpop.xlane.xlu0 %565
  %vm567 = vcmp.eq.f32.partialorder %v564, %v566
  %v568 = vsel %vm567, %v563, inf
  %569 = vmin.xlane.f32.xlu0 %v568
  %v570 = vpop.xlane.xlu0 %569
  %v571 = vcvt.f32.s32 %v570
  %v572 = vcvt.f32.s32 %v566
  %v573 = vshll.u32 %v572, 16
  %v574 = vadd.s32 %v573, %v571
  %v575 = vand.u32 %v377, 65535
  %v576 = vshra.s32 %v377, 16
  %v577 = vcvt.s32.f32 %v575
  %v578 = vcvt.s32.f32 %v576
  %579 = vmin.xlane.f32.xlu0 %v578
  %v580 = vpop.xlane.xlu0 %579
  %vm581 = vcmp.eq.f32.partialorder %v578, %v580
  %v582 = vsel %vm581, %v577, inf
  %583 = vmin.xlane.f32.xlu0 %v582
  %v584 = vpop.xlane.xlu0 %583
  %v585 = vcvt.f32.s32 %v584
  %v586 = vcvt.f32.s32 %v580
  %v587 = vshll.u32 %v586, 16
  %v588 = vadd.s32 %v587, %v585
  %v589 = vand.u32 %v378, 65535
  %v590 = vshra.s32 %v378, 16
  %v591 = vcvt.s32.f32 %v589
  %v592 = vcvt.s32.f32 %v590
  %593 = vmin.xlane.f32.xlu0 %v592
  %v594 = vpop.xlane.xlu0 %593
  %vm595 = vcmp.eq.f32.partialorder %v592, %v594
  %v596 = vsel %vm595, %v591, inf
  %597 = vmin.xlane.f32.xlu0 %v596
  %v598 = vpop.xlane.xlu0 %597
  %v599 = vcvt.f32.s32 %v598
  %v600 = vcvt.f32.s32 %v594
  %v601 = vshll.u32 %v600, 16
  %v602 = vadd.s32 %v601, %v599
  %vm603 = vcmp.eq.s32.totalorder %v314, %v392
  %vm604 = vcmp.eq.s32.totalorder %v314, %v406
  %vm605 = vcmp.eq.s32.totalorder %v314, %v420
  %vm606 = vcmp.eq.s32.totalorder %v314, %v434
  %vm607 = vcmp.eq.s32.totalorder %v314, %v448
  %vm608 = vcmp.eq.s32.totalorder %v314, %v462
  %vm609 = vcmp.eq.s32.totalorder %v314, %v476
  %vm610 = vcmp.eq.s32.totalorder %v314, %v490
  %vm611 = vcmp.eq.s32.totalorder %v314, %v504
  %vm612 = vcmp.eq.s32.totalorder %v314, %v518
  %vm613 = vcmp.eq.s32.totalorder %v314, %v532
  %vm614 = vcmp.eq.s32.totalorder %v314, %v546
  %vm615 = vcmp.eq.s32.totalorder %v314, %v560
  %vm616 = vcmp.eq.s32.totalorder %v314, %v574
  %vm617 = vcmp.eq.s32.totalorder %v314, %v588
  %vm618 = vcmp.eq.s32.totalorder %v314, %v602
  %v619 = vsel %vm603, inf, %v235
  %v620 = vsel %vm604, inf, %v240
  %v621 = vsel %vm605, inf, %v245
  %v622 = vsel %vm606, inf, %v250
  %v623 = vsel %vm607, inf, %v255
  %v624 = vsel %vm608, inf, %v260
  %v625 = vsel %vm609, inf, %v265
  %v626 = vsel %vm610, inf, %v270
  %v627 = vsel %vm611, inf, %v275
  %v628 = vsel %vm612, inf, %v280
  %v629 = vsel %vm613, inf, %v285
  %v630 = vsel %vm614, inf, %v290
  %v631 = vsel %vm615, inf, %v295
  %v632 = vsel %vm616, inf, %v300
  %v633 = vsel %vm617, inf, %v305
  %v634 = vsel %vm618, inf, %v310
  %635 = vmin.xlane.f32.xlu0 %v619
  %v636 = vpop.xlane.xlu0 %635
  %637 = vmin.xlane.f32.xlu0 %v620
  %v638 = vpop.xlane.xlu0 %637
  %639 = vmin.xlane.f32.xlu0 %v621
  %v640 = vpop.xlane.xlu0 %639
  %641 = vmin.xlane.f32.xlu0 %v622
  %v642 = vpop.xlane.xlu0 %641
  %643 = vmin.xlane.f32.xlu0 %v623
  %v644 = vpop.xlane.xlu0 %643
  %645 = vmin.xlane.f32.xlu0 %v624
  %v646 = vpop.xlane.xlu0 %645
  %647 = vmin.xlane.f32.xlu0 %v625
  %v648 = vpop.xlane.xlu0 %647
  %649 = vmin.xlane.f32.xlu0 %v626
  %v650 = vpop.xlane.xlu0 %649
  %651 = vmin.xlane.f32.xlu0 %v627
  %v652 = vpop.xlane.xlu0 %651
  %653 = vmin.xlane.f32.xlu0 %v628
  %v654 = vpop.xlane.xlu0 %653
  %655 = vmin.xlane.f32.xlu0 %v629
  %v656 = vpop.xlane.xlu0 %655
  %657 = vmin.xlane.f32.xlu0 %v630
  %v658 = vpop.xlane.xlu0 %657
  %659 = vmin.xlane.f32.xlu0 %v631
  %v660 = vpop.xlane.xlu0 %659
  %661 = vmin.xlane.f32.xlu0 %v632
  %v662 = vpop.xlane.xlu0 %661
  %663 = vmin.xlane.f32.xlu0 %v633
  %v664 = vpop.xlane.xlu0 %663
  %665 = vmin.xlane.f32.xlu0 %v634
  %v666 = vpop.xlane.xlu0 %665
  %vm667 = vcmp.eq.f32.partialorder %v619, %v636
  %vm668 = vcmp.eq.f32.partialorder %v620, %v638
  %vm669 = vcmp.eq.f32.partialorder %v621, %v640
  %vm670 = vcmp.eq.f32.partialorder %v622, %v642
  %vm671 = vcmp.eq.f32.partialorder %v623, %v644
  %vm672 = vcmp.eq.f32.partialorder %v624, %v646
  %vm673 = vcmp.eq.f32.partialorder %v625, %v648
  %vm674 = vcmp.eq.f32.partialorder %v626, %v650
  %vm675 = vcmp.eq.f32.partialorder %v627, %v652
  %vm676 = vcmp.eq.f32.partialorder %v628, %v654
  %vm677 = vcmp.eq.f32.partialorder %v629, %v656
  %vm678 = vcmp.eq.f32.partialorder %v630, %v658
  %vm679 = vcmp.eq.f32.partialorder %v631, %v660
  %vm680 = vcmp.eq.f32.partialorder %v632, %v662
  %vm681 = vcmp.eq.f32.partialorder %v633, %v664
  %vm682 = vcmp.eq.f32.partialorder %v634, %v666
  %v683 = vsel %vm667, %v314, 128
  %v684 = vsel %vm668, %v314, 128
  %v685 = vsel %vm669, %v314, 128
  %v686 = vsel %vm670, %v314, 128
  %v687 = vsel %vm671, %v314, 128
  %v688 = vsel %vm672, %v314, 128
  %v689 = vsel %vm673, %v314, 128
  %v690 = vsel %vm674, %v314, 128
  %v691 = vsel %vm675, %v314, 128
  %v692 = vsel %vm676, %v314, 128
  %v693 = vsel %vm677, %v314, 128
  %v694 = vsel %vm678, %v314, 128
  %v695 = vsel %vm679, %v314, 128
  %v696 = vsel %vm680, %v314, 128
  %v697 = vsel %vm681, %v314, 128
  %v698 = vsel %vm682, %v314, 128
  %v699 = vand.u32 %v683, 65535
  %v700 = vshra.s32 %v683, 16
  %v701 = vcvt.s32.f32 %v699
  %v702 = vcvt.s32.f32 %v700
  %703 = vmin.xlane.f32.xlu0 %v702
  %v704 = vpop.xlane.xlu0 %703
  %vm705 = vcmp.eq.f32.partialorder %v702, %v704
  %v706 = vsel %vm705, %v701, inf
  %707 = vmin.xlane.f32.xlu0 %v706
  %v708 = vpop.xlane.xlu0 %707
  %v709 = vcvt.f32.s32 %v708
  %v710 = vcvt.f32.s32 %v704
  %v711 = vshll.u32 %v710, 16
  %v712 = vadd.s32 %v711, %v709
  %v713 = vand.u32 %v684, 65535
  %v714 = vshra.s32 %v684, 16
  %v715 = vcvt.s32.f32 %v713
  %v716 = vcvt.s32.f32 %v714
  %717 = vmin.xlane.f32.xlu0 %v716
  %v718 = vpop.xlane.xlu0 %717
  %vm719 = vcmp.eq.f32.partialorder %v716, %v718
  %v720 = vsel %vm719, %v715, inf
  %721 = vmin.xlane.f32.xlu0 %v720
  %v722 = vpop.xlane.xlu0 %721
  %v723 = vcvt.f32.s32 %v722
  %v724 = vcvt.f32.s32 %v718
  %v725 = vshll.u32 %v724, 16
  %v726 = vadd.s32 %v725, %v723
  %v727 = vand.u32 %v685, 65535
  %v728 = vshra.s32 %v685, 16
  %v729 = vcvt.s32.f32 %v727
  %v730 = vcvt.s32.f32 %v728
  %731 = vmin.xlane.f32.xlu0 %v730
  %v732 = vpop.xlane.xlu0 %731
  %vm733 = vcmp.eq.f32.partialorder %v730, %v732
  %v734 = vsel %vm733, %v729, inf
  %735 = vmin.xlane.f32.xlu0 %v734
  %v736 = vpop.xlane.xlu0 %735
  %v737 = vcvt.f32.s32 %v736
  %v738 = vcvt.f32.s32 %v732
  %v739 = vshll.u32 %v738, 16
  %v740 = vadd.s32 %v739, %v737
  %v741 = vand.u32 %v686, 65535
  %v742 = vshra.s32 %v686, 16
  %v743 = vcvt.s32.f32 %v741
  %v744 = vcvt.s32.f32 %v742
  %745 = vmin.xlane.f32.xlu0 %v744
  %v746 = vpop.xlane.xlu0 %745
  %vm747 = vcmp.eq.f32.partialorder %v744, %v746
  %v748 = vsel %vm747, %v743, inf
  %749 = vmin.xlane.f32.xlu0 %v748
  %v750 = vpop.xlane.xlu0 %749
  %v751 = vcvt.f32.s32 %v750
  %v752 = vcvt.f32.s32 %v746
  %v753 = vshll.u32 %v752, 16
  %v754 = vadd.s32 %v753, %v751
  %v755 = vand.u32 %v687, 65535
  %v756 = vshra.s32 %v687, 16
  %v757 = vcvt.s32.f32 %v755
  %v758 = vcvt.s32.f32 %v756
  %759 = vmin.xlane.f32.xlu0 %v758
  %v760 = vpop.xlane.xlu0 %759
  %vm761 = vcmp.eq.f32.partialorder %v758, %v760
  %v762 = vsel %vm761, %v757, inf
  %763 = vmin.xlane.f32.xlu0 %v762
  %v764 = vpop.xlane.xlu0 %763
  %v765 = vcvt.f32.s32 %v764
  %v766 = vcvt.f32.s32 %v760
  %v767 = vshll.u32 %v766, 16
  %v768 = vadd.s32 %v767, %v765
  %v769 = vand.u32 %v688, 65535
  %v770 = vshra.s32 %v688, 16
  %v771 = vcvt.s32.f32 %v769
  %v772 = vcvt.s32.f32 %v770
  %773 = vmin.xlane.f32.xlu0 %v772
  %v774 = vpop.xlane.xlu0 %773
  %vm775 = vcmp.eq.f32.partialorder %v772, %v774
  %v776 = vsel %vm775, %v771, inf
  %777 = vmin.xlane.f32.xlu0 %v776
  %v778 = vpop.xlane.xlu0 %777
  %v779 = vcvt.f32.s32 %v778
  %v780 = vcvt.f32.s32 %v774
  %v781 = vshll.u32 %v780, 16
  %v782 = vadd.s32 %v781, %v779
  %v783 = vand.u32 %v689, 65535
  %v784 = vshra.s32 %v689, 16
  %v785 = vcvt.s32.f32 %v783
  %v786 = vcvt.s32.f32 %v784
  %787 = vmin.xlane.f32.xlu0 %v786
  %v788 = vpop.xlane.xlu0 %787
  %vm789 = vcmp.eq.f32.partialorder %v786, %v788
  %v790 = vsel %vm789, %v785, inf
  %791 = vmin.xlane.f32.xlu0 %v790
  %v792 = vpop.xlane.xlu0 %791
  %v793 = vcvt.f32.s32 %v792
  %v794 = vcvt.f32.s32 %v788
  %v795 = vshll.u32 %v794, 16
  %v796 = vadd.s32 %v795, %v793
  %v797 = vand.u32 %v690, 65535
  %v798 = vshra.s32 %v690, 16
  %v799 = vcvt.s32.f32 %v797
  %v800 = vcvt.s32.f32 %v798
  %801 = vmin.xlane.f32.xlu0 %v800
  %v802 = vpop.xlane.xlu0 %801
  %vm803 = vcmp.eq.f32.partialorder %v800, %v802
  %v804 = vsel %vm803, %v799, inf
  %805 = vmin.xlane.f32.xlu0 %v804
  %v806 = vpop.xlane.xlu0 %805
  %v807 = vcvt.f32.s32 %v806
  %v808 = vcvt.f32.s32 %v802
  %v809 = vshll.u32 %v808, 16
  %v810 = vadd.s32 %v809, %v807
  %v811 = vand.u32 %v691, 65535
  %v812 = vshra.s32 %v691, 16
  %v813 = vcvt.s32.f32 %v811
  %v814 = vcvt.s32.f32 %v812
  %815 = vmin.xlane.f32.xlu0 %v814
  %v816 = vpop.xlane.xlu0 %815
  %vm817 = vcmp.eq.f32.partialorder %v814, %v816
  %v818 = vsel %vm817, %v813, inf
  %819 = vmin.xlane.f32.xlu0 %v818
  %v820 = vpop.xlane.xlu0 %819
  %v821 = vcvt.f32.s32 %v820
  %v822 = vcvt.f32.s32 %v816
  %v823 = vshll.u32 %v822, 16
  %v824 = vadd.s32 %v823, %v821
  %v825 = vand.u32 %v692, 65535
  %v826 = vshra.s32 %v692, 16
  %v827 = vcvt.s32.f32 %v825
  %v828 = vcvt.s32.f32 %v826
  %829 = vmin.xlane.f32.xlu0 %v828
  %v830 = vpop.xlane.xlu0 %829
  %vm831 = vcmp.eq.f32.partialorder %v828, %v830
  %v832 = vsel %vm831, %v827, inf
  %833 = vmin.xlane.f32.xlu0 %v832
  %v834 = vpop.xlane.xlu0 %833
  %v835 = vcvt.f32.s32 %v834
  %v836 = vcvt.f32.s32 %v830
  %v837 = vshll.u32 %v836, 16
  %v838 = vadd.s32 %v837, %v835
  %v839 = vand.u32 %v693, 65535
  %v840 = vshra.s32 %v693, 16
  %v841 = vcvt.s32.f32 %v839
  %v842 = vcvt.s32.f32 %v840
  %843 = vmin.xlane.f32.xlu0 %v842
  %v844 = vpop.xlane.xlu0 %843
  %vm845 = vcmp.eq.f32.partialorder %v842, %v844
  %v846 = vsel %vm845, %v841, inf
  %847 = vmin.xlane.f32.xlu0 %v846
  %v848 = vpop.xlane.xlu0 %847
  %v849 = vcvt.f32.s32 %v848
  %v850 = vcvt.f32.s32 %v844
  %v851 = vshll.u32 %v850, 16
  %v852 = vadd.s32 %v851, %v849
  %v853 = vand.u32 %v694, 65535
  %v854 = vshra.s32 %v694, 16
  %v855 = vcvt.s32.f32 %v853
  %v856 = vcvt.s32.f32 %v854
  %857 = vmin.xlane.f32.xlu0 %v856
  %v858 = vpop.xlane.xlu0 %857
  %vm859 = vcmp.eq.f32.partialorder %v856, %v858
  %v860 = vsel %vm859, %v855, inf
  %861 = vmin.xlane.f32.xlu0 %v860
  %v862 = vpop.xlane.xlu0 %861
  %v863 = vcvt.f32.s32 %v862
  %v864 = vcvt.f32.s32 %v858
  %v865 = vshll.u32 %v864, 16
  %v866 = vadd.s32 %v865, %v863
  %v867 = vand.u32 %v695, 65535
  %v868 = vshra.s32 %v695, 16
  %v869 = vcvt.s32.f32 %v867
  %v870 = vcvt.s32.f32 %v868
  %871 = vmin.xlane.f32.xlu0 %v870
  %v872 = vpop.xlane.xlu0 %871
  %vm873 = vcmp.eq.f32.partialorder %v870, %v872
  %v874 = vsel %vm873, %v869, inf
  %875 = vmin.xlane.f32.xlu0 %v874
  %v876 = vpop.xlane.xlu0 %875
  %v877 = vcvt.f32.s32 %v876
  %v878 = vcvt.f32.s32 %v872
  %v879 = vshll.u32 %v878, 16
  %v880 = vadd.s32 %v879, %v877
  %v881 = vand.u32 %v696, 65535
  %v882 = vshra.s32 %v696, 16
  %v883 = vcvt.s32.f32 %v881
  %v884 = vcvt.s32.f32 %v882
  %885 = vmin.xlane.f32.xlu0 %v884
  %v886 = vpop.xlane.xlu0 %885
  %vm887 = vcmp.eq.f32.partialorder %v884, %v886
  %v888 = vsel %vm887, %v883, inf
  %889 = vmin.xlane.f32.xlu0 %v888
  %v890 = vpop.xlane.xlu0 %889
  %v891 = vcvt.f32.s32 %v890
  %v892 = vcvt.f32.s32 %v886
  %v893 = vshll.u32 %v892, 16
  %v894 = vadd.s32 %v893, %v891
  %v895 = vand.u32 %v697, 65535
  %v896 = vshra.s32 %v697, 16
  %v897 = vcvt.s32.f32 %v895
  %v898 = vcvt.s32.f32 %v896
  %899 = vmin.xlane.f32.xlu0 %v898
  %v900 = vpop.xlane.xlu0 %899
  %vm901 = vcmp.eq.f32.partialorder %v898, %v900
  %v902 = vsel %vm901, %v897, inf
  %903 = vmin.xlane.f32.xlu0 %v902
  %v904 = vpop.xlane.xlu0 %903
  %v905 = vcvt.f32.s32 %v904
  %v906 = vcvt.f32.s32 %v900
  %v907 = vshll.u32 %v906, 16
  %v908 = vadd.s32 %v907, %v905
  %v909 = vand.u32 %v698, 65535
  %v910 = vshra.s32 %v698, 16
  %v911 = vcvt.s32.f32 %v909
  %v912 = vcvt.s32.f32 %v910
  %913 = vmin.xlane.f32.xlu0 %v912
  %v914 = vpop.xlane.xlu0 %913
  %vm915 = vcmp.eq.f32.partialorder %v912, %v914
  %v916 = vsel %vm915, %v911, inf
  %917 = vmin.xlane.f32.xlu0 %v916
  %v918 = vpop.xlane.xlu0 %917
  %v919 = vcvt.f32.s32 %v918
  %v920 = vcvt.f32.s32 %v914
  %v921 = vshll.u32 %v920, 16
  %v922 = vadd.s32 %v921, %v919
  %vm923 = vcmp.eq.s32.totalorder %v314, %v712
  %vm924 = vcmp.eq.s32.totalorder %v314, %v726
  %vm925 = vcmp.eq.s32.totalorder %v314, %v740
  %vm926 = vcmp.eq.s32.totalorder %v314, %v754
  %vm927 = vcmp.eq.s32.totalorder %v314, %v768
  %vm928 = vcmp.eq.s32.totalorder %v314, %v782
  %vm929 = vcmp.eq.s32.totalorder %v314, %v796
  %vm930 = vcmp.eq.s32.totalorder %v314, %v810
  %vm931 = vcmp.eq.s32.totalorder %v314, %v824
  %vm932 = vcmp.eq.s32.totalorder %v314, %v838
  %vm933 = vcmp.eq.s32.totalorder %v314, %v852
  %vm934 = vcmp.eq.s32.totalorder %v314, %v866
  %vm935 = vcmp.eq.s32.totalorder %v314, %v880
  %vm936 = vcmp.eq.s32.totalorder %v314, %v894
  %vm937 = vcmp.eq.s32.totalorder %v314, %v908
  %vm938 = vcmp.eq.s32.totalorder %v314, %v922
  %v939 = vsel %vm923, inf, %v619
  %v940 = vsel %vm924, inf, %v620
  %v941 = vsel %vm925, inf, %v621
  %v942 = vsel %vm926, inf, %v622
  %v943 = vsel %vm927, inf, %v623
  %v944 = vsel %vm928, inf, %v624
  %v945 = vsel %vm929, inf, %v625
  %v946 = vsel %vm930, inf, %v626
  %v947 = vsel %vm931, inf, %v627
  %v948 = vsel %vm932, inf, %v628
  %v949 = vsel %vm933, inf, %v629
  %v950 = vsel %vm934, inf, %v630
  %v951 = vsel %vm935, inf, %v631
  %v952 = vsel %vm936, inf, %v632
  %v953 = vsel %vm937, inf, %v633
  %v954 = vsel %vm938, inf, %v634
  %955 = vmin.xlane.f32.xlu0 %v939
  %v956 = vpop.xlane.xlu0 %955
  %957 = vmin.xlane.f32.xlu0 %v940
  %v958 = vpop.xlane.xlu0 %957
  %959 = vmin.xlane.f32.xlu0 %v941
  %v960 = vpop.xlane.xlu0 %959
  %961 = vmin.xlane.f32.xlu0 %v942
  %v962 = vpop.xlane.xlu0 %961
  %963 = vmin.xlane.f32.xlu0 %v943
  %v964 = vpop.xlane.xlu0 %963
  %965 = vmin.xlane.f32.xlu0 %v944
  %v966 = vpop.xlane.xlu0 %965
  %967 = vmin.xlane.f32.xlu0 %v945
  %v968 = vpop.xlane.xlu0 %967
  %969 = vmin.xlane.f32.xlu0 %v946
  %v970 = vpop.xlane.xlu0 %969
  %971 = vmin.xlane.f32.xlu0 %v947
  %v972 = vpop.xlane.xlu0 %971
  %973 = vmin.xlane.f32.xlu0 %v948
  %v974 = vpop.xlane.xlu0 %973
  %975 = vmin.xlane.f32.xlu0 %v949
  %v976 = vpop.xlane.xlu0 %975
  %977 = vmin.xlane.f32.xlu0 %v950
  %v978 = vpop.xlane.xlu0 %977
  %979 = vmin.xlane.f32.xlu0 %v951
  %v980 = vpop.xlane.xlu0 %979
  %981 = vmin.xlane.f32.xlu0 %v952
  %v982 = vpop.xlane.xlu0 %981
  %983 = vmin.xlane.f32.xlu0 %v953
  %v984 = vpop.xlane.xlu0 %983
  %985 = vmin.xlane.f32.xlu0 %v954
  %v986 = vpop.xlane.xlu0 %985
  %vm987 = vcmp.eq.f32.partialorder %v939, %v956
  %vm988 = vcmp.eq.f32.partialorder %v940, %v958
  %vm989 = vcmp.eq.f32.partialorder %v941, %v960
  %vm990 = vcmp.eq.f32.partialorder %v942, %v962
  %vm991 = vcmp.eq.f32.partialorder %v943, %v964
  %vm992 = vcmp.eq.f32.partialorder %v944, %v966
  %vm993 = vcmp.eq.f32.partialorder %v945, %v968
  %vm994 = vcmp.eq.f32.partialorder %v946, %v970
  %vm995 = vcmp.eq.f32.partialorder %v947, %v972
  %vm996 = vcmp.eq.f32.partialorder %v948, %v974
  %vm997 = vcmp.eq.f32.partialorder %v949, %v976
  %vm998 = vcmp.eq.f32.partialorder %v950, %v978
  %vm999 = vcmp.eq.f32.partialorder %v951, %v980
  %vm1000 = vcmp.eq.f32.partialorder %v952, %v982
  %vm1001 = vcmp.eq.f32.partialorder %v953, %v984
  %vm1002 = vcmp.eq.f32.partialorder %v954, %v986
  %v1003 = vsel %vm987, %v314, 128
  %v1004 = vsel %vm988, %v314, 128
  %v1005 = vsel %vm989, %v314, 128
  %v1006 = vsel %vm990, %v314, 128
  %v1007 = vsel %vm991, %v314, 128
  %v1008 = vsel %vm992, %v314, 128
  %v1009 = vsel %vm993, %v314, 128
  %v1010 = vsel %vm994, %v314, 128
  %v1011 = vsel %vm995, %v314, 128
  %v1012 = vsel %vm996, %v314, 128
  %v1013 = vsel %vm997, %v314, 128
  %v1014 = vsel %vm998, %v314, 128
  %v1015 = vsel %vm999, %v314, 128
  %v1016 = vsel %vm1000, %v314, 128
  %v1017 = vsel %vm1001, %v314, 128
  %v1018 = vsel %vm1002, %v314, 128
  %v1019 = vand.u32 %v1003, 65535
  %v1020 = vshra.s32 %v1003, 16
  %v1021 = vcvt.s32.f32 %v1019
  %v1022 = vcvt.s32.f32 %v1020
  %1023 = vmin.xlane.f32.xlu0 %v1022
  %v1024 = vpop.xlane.xlu0 %1023
  %vm1025 = vcmp.eq.f32.partialorder %v1022, %v1024
  %v1026 = vsel %vm1025, %v1021, inf
  %1027 = vmin.xlane.f32.xlu0 %v1026
  %v1028 = vpop.xlane.xlu0 %1027
  %v1029 = vcvt.f32.s32 %v1028
  %v1030 = vcvt.f32.s32 %v1024
  %v1031 = vshll.u32 %v1030, 16
  %v1032 = vadd.s32 %v1031, %v1029
  %v1033 = vand.u32 %v1004, 65535
  %v1034 = vshra.s32 %v1004, 16
  %v1035 = vcvt.s32.f32 %v1033
  %v1036 = vcvt.s32.f32 %v1034
  %1037 = vmin.xlane.f32.xlu0 %v1036
  %v1038 = vpop.xlane.xlu0 %1037
  %vm1039 = vcmp.eq.f32.partialorder %v1036, %v1038
  %v1040 = vsel %vm1039, %v1035, inf
  %1041 = vmin.xlane.f32.xlu0 %v1040
  %v1042 = vpop.xlane.xlu0 %1041
  %v1043 = vcvt.f32.s32 %v1042
  %v1044 = vcvt.f32.s32 %v1038
  %v1045 = vshll.u32 %v1044, 16
  %v1046 = vadd.s32 %v1045, %v1043
  %v1047 = vand.u32 %v1005, 65535
  %v1048 = vshra.s32 %v1005, 16
  %v1049 = vcvt.s32.f32 %v1047
  %v1050 = vcvt.s32.f32 %v1048
  %1051 = vmin.xlane.f32.xlu0 %v1050
  %v1052 = vpop.xlane.xlu0 %1051
  %vm1053 = vcmp.eq.f32.partialorder %v1050, %v1052
  %v1054 = vsel %vm1053, %v1049, inf
  %1055 = vmin.xlane.f32.xlu0 %v1054
  %v1056 = vpop.xlane.xlu0 %1055
  %v1057 = vcvt.f32.s32 %v1056
  %v1058 = vcvt.f32.s32 %v1052
  %v1059 = vshll.u32 %v1058, 16
  %v1060 = vadd.s32 %v1059, %v1057
  %v1061 = vand.u32 %v1006, 65535
  %v1062 = vshra.s32 %v1006, 16
  %v1063 = vcvt.s32.f32 %v1061
  %v1064 = vcvt.s32.f32 %v1062
  %1065 = vmin.xlane.f32.xlu0 %v1064
  %v1066 = vpop.xlane.xlu0 %1065
  %vm1067 = vcmp.eq.f32.partialorder %v1064, %v1066
  %v1068 = vsel %vm1067, %v1063, inf
  %1069 = vmin.xlane.f32.xlu0 %v1068
  %v1070 = vpop.xlane.xlu0 %1069
  %v1071 = vcvt.f32.s32 %v1070
  %v1072 = vcvt.f32.s32 %v1066
  %v1073 = vshll.u32 %v1072, 16
  %v1074 = vadd.s32 %v1073, %v1071
  %v1075 = vand.u32 %v1007, 65535
  %v1076 = vshra.s32 %v1007, 16
  %v1077 = vcvt.s32.f32 %v1075
  %v1078 = vcvt.s32.f32 %v1076
  %1079 = vmin.xlane.f32.xlu0 %v1078
  %v1080 = vpop.xlane.xlu0 %1079
  %vm1081 = vcmp.eq.f32.partialorder %v1078, %v1080
  %v1082 = vsel %vm1081, %v1077, inf
  %1083 = vmin.xlane.f32.xlu0 %v1082
  %v1084 = vpop.xlane.xlu0 %1083
  %v1085 = vcvt.f32.s32 %v1084
  %v1086 = vcvt.f32.s32 %v1080
  %v1087 = vshll.u32 %v1086, 16
  %v1088 = vadd.s32 %v1087, %v1085
  %v1089 = vand.u32 %v1008, 65535
  %v1090 = vshra.s32 %v1008, 16
  %v1091 = vcvt.s32.f32 %v1089
  %v1092 = vcvt.s32.f32 %v1090
  %1093 = vmin.xlane.f32.xlu0 %v1092
  %v1094 = vpop.xlane.xlu0 %1093
  %vm1095 = vcmp.eq.f32.partialorder %v1092, %v1094
  %v1096 = vsel %vm1095, %v1091, inf
  %1097 = vmin.xlane.f32.xlu0 %v1096
  %v1098 = vpop.xlane.xlu0 %1097
  %v1099 = vcvt.f32.s32 %v1098
  %v1100 = vcvt.f32.s32 %v1094
  %v1101 = vshll.u32 %v1100, 16
  %v1102 = vadd.s32 %v1101, %v1099
  %v1103 = vand.u32 %v1009, 65535
  %v1104 = vshra.s32 %v1009, 16
  %v1105 = vcvt.s32.f32 %v1103
  %v1106 = vcvt.s32.f32 %v1104
  %1107 = vmin.xlane.f32.xlu0 %v1106
  %v1108 = vpop.xlane.xlu0 %1107
  %vm1109 = vcmp.eq.f32.partialorder %v1106, %v1108
  %v1110 = vsel %vm1109, %v1105, inf
  %1111 = vmin.xlane.f32.xlu0 %v1110
  %v1112 = vpop.xlane.xlu0 %1111
  %v1113 = vcvt.f32.s32 %v1112
  %v1114 = vcvt.f32.s32 %v1108
  %v1115 = vshll.u32 %v1114, 16
  %v1116 = vadd.s32 %v1115, %v1113
  %v1117 = vand.u32 %v1010, 65535
  %v1118 = vshra.s32 %v1010, 16
  %v1119 = vcvt.s32.f32 %v1117
  %v1120 = vcvt.s32.f32 %v1118
  %1121 = vmin.xlane.f32.xlu0 %v1120
  %v1122 = vpop.xlane.xlu0 %1121
  %vm1123 = vcmp.eq.f32.partialorder %v1120, %v1122
  %v1124 = vsel %vm1123, %v1119, inf
  %1125 = vmin.xlane.f32.xlu0 %v1124
  %v1126 = vpop.xlane.xlu0 %1125
  %v1127 = vcvt.f32.s32 %v1126
  %v1128 = vcvt.f32.s32 %v1122
  %v1129 = vshll.u32 %v1128, 16
  %v1130 = vadd.s32 %v1129, %v1127
  %v1131 = vand.u32 %v1011, 65535
  %v1132 = vshra.s32 %v1011, 16
  %v1133 = vcvt.s32.f32 %v1131
  %v1134 = vcvt.s32.f32 %v1132
  %1135 = vmin.xlane.f32.xlu0 %v1134
  %v1136 = vpop.xlane.xlu0 %1135
  %vm1137 = vcmp.eq.f32.partialorder %v1134, %v1136
  %v1138 = vsel %vm1137, %v1133, inf
  %1139 = vmin.xlane.f32.xlu0 %v1138
  %v1140 = vpop.xlane.xlu0 %1139
  %v1141 = vcvt.f32.s32 %v1140
  %v1142 = vcvt.f32.s32 %v1136
  %v1143 = vshll.u32 %v1142, 16
  %v1144 = vadd.s32 %v1143, %v1141
  %v1145 = vand.u32 %v1012, 65535
  %v1146 = vshra.s32 %v1012, 16
  %v1147 = vcvt.s32.f32 %v1145
  %v1148 = vcvt.s32.f32 %v1146
  %1149 = vmin.xlane.f32.xlu0 %v1148
  %v1150 = vpop.xlane.xlu0 %1149
  %vm1151 = vcmp.eq.f32.partialorder %v1148, %v1150
  %v1152 = vsel %vm1151, %v1147, inf
  %1153 = vmin.xlane.f32.xlu0 %v1152
  %v1154 = vpop.xlane.xlu0 %1153
  %v1155 = vcvt.f32.s32 %v1154
  %v1156 = vcvt.f32.s32 %v1150
  %v1157 = vshll.u32 %v1156, 16
  %v1158 = vadd.s32 %v1157, %v1155
  %v1159 = vand.u32 %v1013, 65535
  %v1160 = vshra.s32 %v1013, 16
  %v1161 = vcvt.s32.f32 %v1159
  %v1162 = vcvt.s32.f32 %v1160
  %1163 = vmin.xlane.f32.xlu0 %v1162
  %v1164 = vpop.xlane.xlu0 %1163
  %vm1165 = vcmp.eq.f32.partialorder %v1162, %v1164
  %v1166 = vsel %vm1165, %v1161, inf
  %1167 = vmin.xlane.f32.xlu0 %v1166
  %v1168 = vpop.xlane.xlu0 %1167
  %v1169 = vcvt.f32.s32 %v1168
  %v1170 = vcvt.f32.s32 %v1164
  %v1171 = vshll.u32 %v1170, 16
  %v1172 = vadd.s32 %v1171, %v1169
  %v1173 = vand.u32 %v1014, 65535
  %v1174 = vshra.s32 %v1014, 16
  %v1175 = vcvt.s32.f32 %v1173
  %v1176 = vcvt.s32.f32 %v1174
  %1177 = vmin.xlane.f32.xlu0 %v1176
  %v1178 = vpop.xlane.xlu0 %1177
  %vm1179 = vcmp.eq.f32.partialorder %v1176, %v1178
  %v1180 = vsel %vm1179, %v1175, inf
  %1181 = vmin.xlane.f32.xlu0 %v1180
  %v1182 = vpop.xlane.xlu0 %1181
  %v1183 = vcvt.f32.s32 %v1182
  %v1184 = vcvt.f32.s32 %v1178
  %v1185 = vshll.u32 %v1184, 16
  %v1186 = vadd.s32 %v1185, %v1183
  %v1187 = vand.u32 %v1015, 65535
  %v1188 = vshra.s32 %v1015, 16
  %v1189 = vcvt.s32.f32 %v1187
  %v1190 = vcvt.s32.f32 %v1188
  %1191 = vmin.xlane.f32.xlu0 %v1190
  %v1192 = vpop.xlane.xlu0 %1191
  %vm1193 = vcmp.eq.f32.partialorder %v1190, %v1192
  %v1194 = vsel %vm1193, %v1189, inf
  %1195 = vmin.xlane.f32.xlu0 %v1194
  %v1196 = vpop.xlane.xlu0 %1195
  %v1197 = vcvt.f32.s32 %v1196
  %v1198 = vcvt.f32.s32 %v1192
  %v1199 = vshll.u32 %v1198, 16
  %v1200 = vadd.s32 %v1199, %v1197
  %v1201 = vand.u32 %v1016, 65535
  %v1202 = vshra.s32 %v1016, 16
  %v1203 = vcvt.s32.f32 %v1201
  %v1204 = vcvt.s32.f32 %v1202
  %1205 = vmin.xlane.f32.xlu0 %v1204
  %v1206 = vpop.xlane.xlu0 %1205
  %vm1207 = vcmp.eq.f32.partialorder %v1204, %v1206
  %v1208 = vsel %vm1207, %v1203, inf
  %1209 = vmin.xlane.f32.xlu0 %v1208
  %v1210 = vpop.xlane.xlu0 %1209
  %v1211 = vcvt.f32.s32 %v1210
  %v1212 = vcvt.f32.s32 %v1206
  %v1213 = vshll.u32 %v1212, 16
  %v1214 = vadd.s32 %v1213, %v1211
  %v1215 = vand.u32 %v1017, 65535
  %v1216 = vshra.s32 %v1017, 16
  %v1217 = vcvt.s32.f32 %v1215
  %v1218 = vcvt.s32.f32 %v1216
  %1219 = vmin.xlane.f32.xlu0 %v1218
  %v1220 = vpop.xlane.xlu0 %1219
  %vm1221 = vcmp.eq.f32.partialorder %v1218, %v1220
  %v1222 = vsel %vm1221, %v1217, inf
  %1223 = vmin.xlane.f32.xlu0 %v1222
  %v1224 = vpop.xlane.xlu0 %1223
  %v1225 = vcvt.f32.s32 %v1224
  %v1226 = vcvt.f32.s32 %v1220
  %v1227 = vshll.u32 %v1226, 16
  %v1228 = vadd.s32 %v1227, %v1225
  %v1229 = vand.u32 %v1018, 65535
  %v1230 = vshra.s32 %v1018, 16
  %v1231 = vcvt.s32.f32 %v1229
  %v1232 = vcvt.s32.f32 %v1230
  %1233 = vmin.xlane.f32.xlu0 %v1232
  %v1234 = vpop.xlane.xlu0 %1233
  %vm1235 = vcmp.eq.f32.partialorder %v1232, %v1234
  %v1236 = vsel %vm1235, %v1231, inf
  %1237 = vmin.xlane.f32.xlu0 %v1236
  %v1238 = vpop.xlane.xlu0 %1237
  %v1239 = vcvt.f32.s32 %v1238
  %v1240 = vcvt.f32.s32 %v1234
  %v1241 = vshll.u32 %v1240, 16
  %v1242 = vadd.s32 %v1241, %v1239
  %vm1243 = vcmp.eq.s32.totalorder %v314, %v1032
  %vm1244 = vcmp.eq.s32.totalorder %v314, %v1046
  %vm1245 = vcmp.eq.s32.totalorder %v314, %v1060
  %vm1246 = vcmp.eq.s32.totalorder %v314, %v1074
  %vm1247 = vcmp.eq.s32.totalorder %v314, %v1088
  %vm1248 = vcmp.eq.s32.totalorder %v314, %v1102
  %vm1249 = vcmp.eq.s32.totalorder %v314, %v1116
  %vm1250 = vcmp.eq.s32.totalorder %v314, %v1130
  %vm1251 = vcmp.eq.s32.totalorder %v314, %v1144
  %vm1252 = vcmp.eq.s32.totalorder %v314, %v1158
  %vm1253 = vcmp.eq.s32.totalorder %v314, %v1172
  %vm1254 = vcmp.eq.s32.totalorder %v314, %v1186
  %vm1255 = vcmp.eq.s32.totalorder %v314, %v1200
  %vm1256 = vcmp.eq.s32.totalorder %v314, %v1214
  %vm1257 = vcmp.eq.s32.totalorder %v314, %v1228
  %vm1258 = vcmp.eq.s32.totalorder %v314, %v1242
  %v1259 = vsel %vm1243, inf, %v939
  %v1260 = vsel %vm1244, inf, %v940
  %v1261 = vsel %vm1245, inf, %v941
  %v1262 = vsel %vm1246, inf, %v942
  %v1263 = vsel %vm1247, inf, %v943
  %v1264 = vsel %vm1248, inf, %v944
  %v1265 = vsel %vm1249, inf, %v945
  %v1266 = vsel %vm1250, inf, %v946
  %v1267 = vsel %vm1251, inf, %v947
  %v1268 = vsel %vm1252, inf, %v948
  %v1269 = vsel %vm1253, inf, %v949
  %v1270 = vsel %vm1254, inf, %v950
  %v1271 = vsel %vm1255, inf, %v951
  %v1272 = vsel %vm1256, inf, %v952
  %v1273 = vsel %vm1257, inf, %v953
  %v1274 = vsel %vm1258, inf, %v954
  %1275 = vmin.xlane.f32.xlu0 %v1259
  %v1276 = vpop.xlane.xlu0 %1275
  %1277 = vmin.xlane.f32.xlu0 %v1260
  %v1278 = vpop.xlane.xlu0 %1277
  %1279 = vmin.xlane.f32.xlu0 %v1261
  %v1280 = vpop.xlane.xlu0 %1279
  %1281 = vmin.xlane.f32.xlu0 %v1262
  %v1282 = vpop.xlane.xlu0 %1281
  %1283 = vmin.xlane.f32.xlu0 %v1263
  %v1284 = vpop.xlane.xlu0 %1283
  %1285 = vmin.xlane.f32.xlu0 %v1264
  %v1286 = vpop.xlane.xlu0 %1285
  %1287 = vmin.xlane.f32.xlu0 %v1265
  %v1288 = vpop.xlane.xlu0 %1287
  %1289 = vmin.xlane.f32.xlu0 %v1266
  %v1290 = vpop.xlane.xlu0 %1289
  %1291 = vmin.xlane.f32.xlu0 %v1267
  %v1292 = vpop.xlane.xlu0 %1291
  %1293 = vmin.xlane.f32.xlu0 %v1268
  %v1294 = vpop.xlane.xlu0 %1293
  %1295 = vmin.xlane.f32.xlu0 %v1269
  %v1296 = vpop.xlane.xlu0 %1295
  %1297 = vmin.xlane.f32.xlu0 %v1270
  %v1298 = vpop.xlane.xlu0 %1297
  %1299 = vmin.xlane.f32.xlu0 %v1271
  %v1300 = vpop.xlane.xlu0 %1299
  %1301 = vmin.xlane.f32.xlu0 %v1272
  %v1302 = vpop.xlane.xlu0 %1301
  %1303 = vmin.xlane.f32.xlu0 %v1273
  %v1304 = vpop.xlane.xlu0 %1303
  %1305 = vmin.xlane.f32.xlu0 %v1274
  %v1306 = vpop.xlane.xlu0 %1305
  %vm1307 = vcmp.eq.f32.partialorder %v1259, %v1276
  %vm1308 = vcmp.eq.f32.partialorder %v1260, %v1278
  %vm1309 = vcmp.eq.f32.partialorder %v1261, %v1280
  %vm1310 = vcmp.eq.f32.partialorder %v1262, %v1282
  %vm1311 = vcmp.eq.f32.partialorder %v1263, %v1284
  %vm1312 = vcmp.eq.f32.partialorder %v1264, %v1286
  %vm1313 = vcmp.eq.f32.partialorder %v1265, %v1288
  %vm1314 = vcmp.eq.f32.partialorder %v1266, %v1290
  %vm1315 = vcmp.eq.f32.partialorder %v1267, %v1292
  %vm1316 = vcmp.eq.f32.partialorder %v1268, %v1294
  %vm1317 = vcmp.eq.f32.partialorder %v1269, %v1296
  %vm1318 = vcmp.eq.f32.partialorder %v1270, %v1298
  %vm1319 = vcmp.eq.f32.partialorder %v1271, %v1300
  %vm1320 = vcmp.eq.f32.partialorder %v1272, %v1302
  %vm1321 = vcmp.eq.f32.partialorder %v1273, %v1304
  %vm1322 = vcmp.eq.f32.partialorder %v1274, %v1306
  %v1323 = vsel %vm1307, %v314, 128
  %v1324 = vsel %vm1308, %v314, 128
  %v1325 = vsel %vm1309, %v314, 128
  %v1326 = vsel %vm1310, %v314, 128
  %v1327 = vsel %vm1311, %v314, 128
  %v1328 = vsel %vm1312, %v314, 128
  %v1329 = vsel %vm1313, %v314, 128
  %v1330 = vsel %vm1314, %v314, 128
  %v1331 = vsel %vm1315, %v314, 128
  %v1332 = vsel %vm1316, %v314, 128
  %v1333 = vsel %vm1317, %v314, 128
  %v1334 = vsel %vm1318, %v314, 128
  %v1335 = vsel %vm1319, %v314, 128
  %v1336 = vsel %vm1320, %v314, 128
  %v1337 = vsel %vm1321, %v314, 128
  %v1338 = vsel %vm1322, %v314, 128
  %v1339 = vand.u32 %v1323, 65535
  %v1340 = vshra.s32 %v1323, 16
  %v1341 = vcvt.s32.f32 %v1339
  %v1342 = vcvt.s32.f32 %v1340
  %1343 = vmin.xlane.f32.xlu0 %v1342
  %v1344 = vpop.xlane.xlu0 %1343
  %vm1345 = vcmp.eq.f32.partialorder %v1342, %v1344
  %v1346 = vsel %vm1345, %v1341, inf
  %1347 = vmin.xlane.f32.xlu0 %v1346
  %v1348 = vpop.xlane.xlu0 %1347
  %v1349 = vcvt.f32.s32 %v1348
  %v1350 = vcvt.f32.s32 %v1344
  %v1351 = vshll.u32 %v1350, 16
  %v1352 = vadd.s32 %v1351, %v1349
  %v1353 = vand.u32 %v1324, 65535
  %v1354 = vshra.s32 %v1324, 16
  %v1355 = vcvt.s32.f32 %v1353
  %v1356 = vcvt.s32.f32 %v1354
  %1357 = vmin.xlane.f32.xlu0 %v1356
  %v1358 = vpop.xlane.xlu0 %1357
  %vm1359 = vcmp.eq.f32.partialorder %v1356, %v1358
  %v1360 = vsel %vm1359, %v1355, inf
  %1361 = vmin.xlane.f32.xlu0 %v1360
  %v1362 = vpop.xlane.xlu0 %1361
  %v1363 = vcvt.f32.s32 %v1362
  %v1364 = vcvt.f32.s32 %v1358
  %v1365 = vshll.u32 %v1364, 16
  %v1366 = vadd.s32 %v1365, %v1363
  %v1367 = vand.u32 %v1325, 65535
  %v1368 = vshra.s32 %v1325, 16
  %v1369 = vcvt.s32.f32 %v1367
  %v1370 = vcvt.s32.f32 %v1368
  %1371 = vmin.xlane.f32.xlu0 %v1370
  %v1372 = vpop.xlane.xlu0 %1371
  %vm1373 = vcmp.eq.f32.partialorder %v1370, %v1372
  %v1374 = vsel %vm1373, %v1369, inf
  %1375 = vmin.xlane.f32.xlu0 %v1374
  %v1376 = vpop.xlane.xlu0 %1375
  %v1377 = vcvt.f32.s32 %v1376
  %v1378 = vcvt.f32.s32 %v1372
  %v1379 = vshll.u32 %v1378, 16
  %v1380 = vadd.s32 %v1379, %v1377
  %v1381 = vand.u32 %v1326, 65535
  %v1382 = vshra.s32 %v1326, 16
  %v1383 = vcvt.s32.f32 %v1381
  %v1384 = vcvt.s32.f32 %v1382
  %1385 = vmin.xlane.f32.xlu0 %v1384
  %v1386 = vpop.xlane.xlu0 %1385
  %vm1387 = vcmp.eq.f32.partialorder %v1384, %v1386
  %v1388 = vsel %vm1387, %v1383, inf
  %1389 = vmin.xlane.f32.xlu0 %v1388
  %v1390 = vpop.xlane.xlu0 %1389
  %v1391 = vcvt.f32.s32 %v1390
  %v1392 = vcvt.f32.s32 %v1386
  %v1393 = vshll.u32 %v1392, 16
  %v1394 = vadd.s32 %v1393, %v1391
  %v1395 = vand.u32 %v1327, 65535
  %v1396 = vshra.s32 %v1327, 16
  %v1397 = vcvt.s32.f32 %v1395
  %v1398 = vcvt.s32.f32 %v1396
  %1399 = vmin.xlane.f32.xlu0 %v1398
  %v1400 = vpop.xlane.xlu0 %1399
  %vm1401 = vcmp.eq.f32.partialorder %v1398, %v1400
  %v1402 = vsel %vm1401, %v1397, inf
  %1403 = vmin.xlane.f32.xlu0 %v1402
  %v1404 = vpop.xlane.xlu0 %1403
  %v1405 = vcvt.f32.s32 %v1404
  %v1406 = vcvt.f32.s32 %v1400
  %v1407 = vshll.u32 %v1406, 16
  %v1408 = vadd.s32 %v1407, %v1405
  %v1409 = vand.u32 %v1328, 65535
  %v1410 = vshra.s32 %v1328, 16
  %v1411 = vcvt.s32.f32 %v1409
  %v1412 = vcvt.s32.f32 %v1410
  %1413 = vmin.xlane.f32.xlu0 %v1412
  %v1414 = vpop.xlane.xlu0 %1413
  %vm1415 = vcmp.eq.f32.partialorder %v1412, %v1414
  %v1416 = vsel %vm1415, %v1411, inf
  %1417 = vmin.xlane.f32.xlu0 %v1416
  %v1418 = vpop.xlane.xlu0 %1417
  %v1419 = vcvt.f32.s32 %v1418
  %v1420 = vcvt.f32.s32 %v1414
  %v1421 = vshll.u32 %v1420, 16
  %v1422 = vadd.s32 %v1421, %v1419
  %v1423 = vand.u32 %v1329, 65535
  %v1424 = vshra.s32 %v1329, 16
  %v1425 = vcvt.s32.f32 %v1423
  %v1426 = vcvt.s32.f32 %v1424
  %1427 = vmin.xlane.f32.xlu0 %v1426
  %v1428 = vpop.xlane.xlu0 %1427
  %vm1429 = vcmp.eq.f32.partialorder %v1426, %v1428
  %v1430 = vsel %vm1429, %v1425, inf
  %1431 = vmin.xlane.f32.xlu0 %v1430
  %v1432 = vpop.xlane.xlu0 %1431
  %v1433 = vcvt.f32.s32 %v1432
  %v1434 = vcvt.f32.s32 %v1428
  %v1435 = vshll.u32 %v1434, 16
  %v1436 = vadd.s32 %v1435, %v1433
  %v1437 = vand.u32 %v1330, 65535
  %v1438 = vshra.s32 %v1330, 16
  %v1439 = vcvt.s32.f32 %v1437
  %v1440 = vcvt.s32.f32 %v1438
  %1441 = vmin.xlane.f32.xlu0 %v1440
  %v1442 = vpop.xlane.xlu0 %1441
  %vm1443 = vcmp.eq.f32.partialorder %v1440, %v1442
  %v1444 = vsel %vm1443, %v1439, inf
  %1445 = vmin.xlane.f32.xlu0 %v1444
  %v1446 = vpop.xlane.xlu0 %1445
  %v1447 = vcvt.f32.s32 %v1446
  %v1448 = vcvt.f32.s32 %v1442
  %v1449 = vshll.u32 %v1448, 16
  %v1450 = vadd.s32 %v1449, %v1447
  %v1451 = vand.u32 %v1331, 65535
  %v1452 = vshra.s32 %v1331, 16
  %v1453 = vcvt.s32.f32 %v1451
  %v1454 = vcvt.s32.f32 %v1452
  %1455 = vmin.xlane.f32.xlu0 %v1454
  %v1456 = vpop.xlane.xlu0 %1455
  %vm1457 = vcmp.eq.f32.partialorder %v1454, %v1456
  %v1458 = vsel %vm1457, %v1453, inf
  %1459 = vmin.xlane.f32.xlu0 %v1458
  %v1460 = vpop.xlane.xlu0 %1459
  %v1461 = vcvt.f32.s32 %v1460
  %v1462 = vcvt.f32.s32 %v1456
  %v1463 = vshll.u32 %v1462, 16
  %v1464 = vadd.s32 %v1463, %v1461
  %v1465 = vand.u32 %v1332, 65535
  %v1466 = vshra.s32 %v1332, 16
  %v1467 = vcvt.s32.f32 %v1465
  %v1468 = vcvt.s32.f32 %v1466
  %1469 = vmin.xlane.f32.xlu0 %v1468
  %v1470 = vpop.xlane.xlu0 %1469
  %vm1471 = vcmp.eq.f32.partialorder %v1468, %v1470
  %v1472 = vsel %vm1471, %v1467, inf
  %1473 = vmin.xlane.f32.xlu0 %v1472
  %v1474 = vpop.xlane.xlu0 %1473
  %v1475 = vcvt.f32.s32 %v1474
  %v1476 = vcvt.f32.s32 %v1470
  %v1477 = vshll.u32 %v1476, 16
  %v1478 = vadd.s32 %v1477, %v1475
  %v1479 = vand.u32 %v1333, 65535
  %v1480 = vshra.s32 %v1333, 16
  %v1481 = vcvt.s32.f32 %v1479
  %v1482 = vcvt.s32.f32 %v1480
  %1483 = vmin.xlane.f32.xlu0 %v1482
  %v1484 = vpop.xlane.xlu0 %1483
  %vm1485 = vcmp.eq.f32.partialorder %v1482, %v1484
  %v1486 = vsel %vm1485, %v1481, inf
  %1487 = vmin.xlane.f32.xlu0 %v1486
  %v1488 = vpop.xlane.xlu0 %1487
  %v1489 = vcvt.f32.s32 %v1488
  %v1490 = vcvt.f32.s32 %v1484
  %v1491 = vshll.u32 %v1490, 16
  %v1492 = vadd.s32 %v1491, %v1489
  %v1493 = vand.u32 %v1334, 65535
  %v1494 = vshra.s32 %v1334, 16
  %v1495 = vcvt.s32.f32 %v1493
  %v1496 = vcvt.s32.f32 %v1494
  %1497 = vmin.xlane.f32.xlu0 %v1496
  %v1498 = vpop.xlane.xlu0 %1497
  %vm1499 = vcmp.eq.f32.partialorder %v1496, %v1498
  %v1500 = vsel %vm1499, %v1495, inf
  %1501 = vmin.xlane.f32.xlu0 %v1500
  %v1502 = vpop.xlane.xlu0 %1501
  %v1503 = vcvt.f32.s32 %v1502
  %v1504 = vcvt.f32.s32 %v1498
  %v1505 = vshll.u32 %v1504, 16
  %v1506 = vadd.s32 %v1505, %v1503
  %v1507 = vand.u32 %v1335, 65535
  %v1508 = vshra.s32 %v1335, 16
  %v1509 = vcvt.s32.f32 %v1507
  %v1510 = vcvt.s32.f32 %v1508
  %1511 = vmin.xlane.f32.xlu0 %v1510
  %v1512 = vpop.xlane.xlu0 %1511
  %vm1513 = vcmp.eq.f32.partialorder %v1510, %v1512
  %v1514 = vsel %vm1513, %v1509, inf
  %1515 = vmin.xlane.f32.xlu0 %v1514
  %v1516 = vpop.xlane.xlu0 %1515
  %v1517 = vcvt.f32.s32 %v1516
  %v1518 = vcvt.f32.s32 %v1512
  %v1519 = vshll.u32 %v1518, 16
  %v1520 = vadd.s32 %v1519, %v1517
  %v1521 = vand.u32 %v1336, 65535
  %v1522 = vshra.s32 %v1336, 16
  %v1523 = vcvt.s32.f32 %v1521
  %v1524 = vcvt.s32.f32 %v1522
  %1525 = vmin.xlane.f32.xlu0 %v1524
  %v1526 = vpop.xlane.xlu0 %1525
  %vm1527 = vcmp.eq.f32.partialorder %v1524, %v1526
  %v1528 = vsel %vm1527, %v1523, inf
  %1529 = vmin.xlane.f32.xlu0 %v1528
  %v1530 = vpop.xlane.xlu0 %1529
  %v1531 = vcvt.f32.s32 %v1530
  %v1532 = vcvt.f32.s32 %v1526
  %v1533 = vshll.u32 %v1532, 16
  %v1534 = vadd.s32 %v1533, %v1531
  %v1535 = vand.u32 %v1337, 65535
  %v1536 = vshra.s32 %v1337, 16
  %v1537 = vcvt.s32.f32 %v1535
  %v1538 = vcvt.s32.f32 %v1536
  %1539 = vmin.xlane.f32.xlu0 %v1538
  %v1540 = vpop.xlane.xlu0 %1539
  %vm1541 = vcmp.eq.f32.partialorder %v1538, %v1540
  %v1542 = vsel %vm1541, %v1537, inf
  %1543 = vmin.xlane.f32.xlu0 %v1542
  %v1544 = vpop.xlane.xlu0 %1543
  %v1545 = vcvt.f32.s32 %v1544
  %v1546 = vcvt.f32.s32 %v1540
  %v1547 = vshll.u32 %v1546, 16
  %v1548 = vadd.s32 %v1547, %v1545
  %v1549 = vand.u32 %v1338, 65535
  %v1550 = vshra.s32 %v1338, 16
  %v1551 = vcvt.s32.f32 %v1549
  %v1552 = vcvt.s32.f32 %v1550
  %1553 = vmin.xlane.f32.xlu0 %v1552
  %v1554 = vpop.xlane.xlu0 %1553
  %vm1555 = vcmp.eq.f32.partialorder %v1552, %v1554
  %v1556 = vsel %vm1555, %v1551, inf
  %1557 = vmin.xlane.f32.xlu0 %v1556
  %v1558 = vpop.xlane.xlu0 %1557
  %v1559 = vcvt.f32.s32 %v1558
  %v1560 = vcvt.f32.s32 %v1554
  %v1561 = vshll.u32 %v1560, 16
  %v1562 = vadd.s32 %v1561, %v1559
  %v1563 = vsel %vm603, 1, 0
  %v1564 = vsel %vm604, 1, 0
  %v1565 = vsel %vm605, 1, 0
  %v1566 = vsel %vm606, 1, 0
  %v1567 = vsel %vm607, 1, 0
  %v1568 = vsel %vm608, 1, 0
  %v1569 = vsel %vm609, 1, 0
  %v1570 = vsel %vm610, 1, 0
  %v1571 = vsel %vm611, 1, 0
  %v1572 = vsel %vm612, 1, 0
  %v1573 = vsel %vm613, 1, 0
  %v1574 = vsel %vm614, 1, 0
  %v1575 = vsel %vm615, 1, 0
  %v1576 = vsel %vm616, 1, 0
  %v1577 = vsel %vm617, 1, 0
  %v1578 = vsel %vm618, 1, 0
  %v1579 = vcvt.s32.f32 %v1563
  %v1580 = vcvt.s32.f32 %v1564
  %v1581 = vcvt.s32.f32 %v1565
  %v1582 = vcvt.s32.f32 %v1566
  %v1583 = vcvt.s32.f32 %v1567
  %v1584 = vcvt.s32.f32 %v1568
  %v1585 = vcvt.s32.f32 %v1569
  %v1586 = vcvt.s32.f32 %v1570
  %v1587 = vcvt.s32.f32 %v1571
  %v1588 = vcvt.s32.f32 %v1572
  %v1589 = vcvt.s32.f32 %v1573
  %v1590 = vcvt.s32.f32 %v1574
  %v1591 = vcvt.s32.f32 %v1575
  %v1592 = vcvt.s32.f32 %v1576
  %v1593 = vcvt.s32.f32 %v1577
  %v1594 = vcvt.s32.f32 %v1578
  %1595 = vmatprep.subr.mxu0 0.0
  %1596 = vmatpush1.msra.mxu0 %v32
  %1597 = vmatprep.subr.mxu0 0.0
  %1598 = vmatpush1.msra.mxu0 %v33
  %1599 = vmatprep.subr.mxu0 0.0
  %1600 = vmatpush1.msra.mxu0 %v34
  %1601 = vmatprep.subr.mxu0 0.0
  %1602 = vmatpush1.msra.mxu0 %v35
  %1603 = vmatprep.subr.mxu0 0.0
  %1604 = vmatpush1.msra.mxu0 %v36
  %1605 = vmatprep.subr.mxu0 0.0
  %1606 = vmatpush1.msra.mxu0 %v37
  %1607 = vmatprep.subr.mxu0 0.0
  %1608 = vmatpush1.msra.mxu0 %v38
  %1609 = vmatprep.subr.mxu0 0.0
  %1610 = vmatpush1.msra.mxu0 %v39
  %1611 = vmatprep.subr.mxu0 0.0
  %1612 = vmatpush1.msra.mxu0 %v40
  %1613 = vmatprep.subr.mxu0 0.0
  %1614 = vmatpush1.msra.mxu0 %v41
  %1615 = vmatprep.subr.mxu0 0.0
  %1616 = vmatpush1.msra.mxu0 %v42
  %1617 = vmatprep.subr.mxu0 0.0
  %1618 = vmatpush1.msra.mxu0 %v43
  %1619 = vmatprep.subr.mxu0 0.0
  %1620 = vmatpush1.msra.mxu0 %v44
  %1621 = vmatprep.subr.mxu0 0.0
  %1622 = vmatpush1.msra.mxu0 %v45
  %1623 = vmatprep.subr.mxu0 0.0
  %1624 = vmatpush1.msra.mxu0 %v46
  %1625 = vmatprep.subr.mxu0 0.0
  %1626 = vmatpush1.msra.mxu0 %v47
  %1627 = vmatprep.subr.mxu0 0.0
  %1628 = vmatpush1.msra.mxu0 0.0
  %1629 = vmatprep.subr.mxu0 0.0
  %1630 = vmatpush1.msra.mxu0 0.0
  %1631 = vmatprep.subr.mxu0 0.0
  %1632 = vmatpush1.msra.mxu0 0.0
  %1633 = vmatprep.subr.mxu0 0.0
  %1634 = vmatpush1.msra.mxu0 0.0
  %1635 = vmatprep.subr.mxu0 0.0
  %1636 = vmatpush1.msra.mxu0 0.0
  %1637 = vmatprep.subr.mxu0 0.0
  %1638 = vmatpush1.msra.mxu0 0.0
  %1639 = vmatprep.subr.mxu0 0.0
  %1640 = vmatpush1.msra.mxu0 0.0
  %1641 = vmatprep.subr.mxu0 0.0
  %1642 = vmatpush1.msra.mxu0 0.0
  %1643 = vmatprep.subr.mxu0 0.0
  %1644 = vmatpush1.msra.mxu0 0.0
  %1645 = vmatprep.subr.mxu0 0.0
  %1646 = vmatpush1.msra.mxu0 0.0
  %1647 = vmatprep.subr.mxu0 0.0
  %1648 = vmatpush1.msra.mxu0 0.0
  %1649 = vmatprep.subr.mxu0 0.0
  %1650 = vmatpush1.msra.mxu0 0.0
  %1651 = vmatprep.subr.mxu0 0.0
  %1652 = vmatpush1.msra.mxu0 0.0
  %1653 = vmatprep.subr.mxu0 0.0
  %1654 = vmatpush1.msra.mxu0 0.0
  %1655 = vmatprep.subr.mxu0 0.0
  %1656 = vmatpush1.msra.mxu0 0.0
  %1657 = vmatprep.subr.mxu0 0.0
  %1658 = vmatpush1.msra.mxu0 0.0
  %1659 = vmatprep.mubr.f32.mxu0 0.0
  %1660 = vmatmul.mubr.f32.gmra.mrb[0].mxu0 %v1579
  %v1661 = vpop.f32.mrb[0].mxu0
  %v1662 = vadd.f32 0.0, %v1661
  %v1663 = vpop.f32.mrb[0].mxu0
  %1664 = vmatprep.mubr.f32.mxu0 0.0
  %1665 = vmatmul.mubr.f32.gmra.mrb[0].mxu0 %v1580
  %v1666 = vpop.f32.mrb[0].mxu0
  %v1667 = vadd.f32 0.0, %v1666
  %v1668 = vpop.f32.mrb[0].mxu0
  %1669 = vmatprep.mubr.f32.mxu0 0.0
  %1670 = vmatmul.mubr.f32.gmra.mrb[0].mxu0 %v1581
  %v1671 = vpop.f32.mrb[0].mxu0
  %v1672 = vadd.f32 0.0, %v1671
  %v1673 = vpop.f32.mrb[0].mxu0
  %1674 = vmatprep.mubr.f32.mxu0 0.0
  %1675 = vmatmul.mubr.f32.gmra.mrb[0].mxu0 %v1582
  %v1676 = vpop.f32.mrb[0].mxu0
  %v1677 = vadd.f32 0.0, %v1676
  %v1678 = vpop.f32.mrb[0].mxu0
  %1679 = vmatprep.mubr.f32.mxu0 0.0
  %1680 = vmatmul.mubr.f32.gmra.mrb[0].mxu0 %v1583
  %v1681 = vpop.f32.mrb[0].mxu0
  %v1682 = vadd.f32 0.0, %v1681
  %v1683 = vpop.f32.mrb[0].mxu0
  %1684 = vmatprep.mubr.f32.mxu0 0.0
  %1685 = vmatmul.mubr.f32.gmra.mrb[0].mxu0 %v1584
  %v1686 = vpop.f32.mrb[0].mxu0
  %v1687 = vadd.f32 0.0, %v1686
  %v1688 = vpop.f32.mrb[0].mxu0
  %1689 = vmatprep.mubr.f32.mxu0 0.0
  %1690 = vmatmul.mubr.f32.gmra.mrb[0].mxu0 %v1585
  %v1691 = vpop.f32.mrb[0].mxu0
  %v1692 = vadd.f32 0.0, %v1691
  %v1693 = vpop.f32.mrb[0].mxu0
  %1694 = vmatprep.mubr.f32.mxu0 0.0
  %1695 = vmatmul.mubr.f32.gmra.mrb[0].mxu0 %v1586
  %v1696 = vpop.f32.mrb[0].mxu0
  %v1697 = vadd.f32 0.0, %v1696
  %v1698 = vpop.f32.mrb[0].mxu0
  %1699 = vmatprep.mubr.f32.mxu0 0.0
  %1700 = vmatmul.mubr.f32.gmra.mrb[0].mxu0 %v1587
  %v1701 = vpop.f32.mrb[0].mxu0
  %v1702 = vadd.f32 0.0, %v1701
  %v1703 = vpop.f32.mrb[0].mxu0
  %1704 = vmatprep.mubr.f32.mxu0 0.0
  %1705 = vmatmul.mubr.f32.gmra.mrb[0].mxu0 %v1588
  %v1706 = vpop.f32.mrb[0].mxu0
  %v1707 = vadd.f32 0.0, %v1706
  %v1708 = vpop.f32.mrb[0].mxu0
  %1709 = vmatprep.mubr.f32.mxu0 0.0
  %1710 = vmatmul.mubr.f32.gmra.mrb[0].mxu0 %v1589
  %v1711 = vpop.f32.mrb[0].mxu0
  %v1712 = vadd.f32 0.0, %v1711
  %v1713 = vpop.f32.mrb[0].mxu0
  %1714 = vmatprep.mubr.f32.mxu0 0.0
  %1715 = vmatmul.mubr.f32.gmra.mrb[0].mxu0 %v1590
  %v1716 = vpop.f32.mrb[0].mxu0
  %v1717 = vadd.f32 0.0, %v1716
  %v1718 = vpop.f32.mrb[0].mxu0
  %1719 = vmatprep.mubr.f32.mxu0 0.0
  %1720 = vmatmul.mubr.f32.gmra.mrb[0].mxu0 %v1591
  %v1721 = vpop.f32.mrb[0].mxu0
  %v1722 = vadd.f32 0.0, %v1721
  %v1723 = vpop.f32.mrb[0].mxu0
  %1724 = vmatprep.mubr.f32.mxu0 0.0
  %1725 = vmatmul.mubr.f32.gmra.mrb[0].mxu0 %v1592
  %v1726 = vpop.f32.mrb[0].mxu0
  %v1727 = vadd.f32 0.0, %v1726
  %v1728 = vpop.f32.mrb[0].mxu0
  %1729 = vmatprep.mubr.f32.mxu0 0.0
  %1730 = vmatmul.mubr.f32.gmra.mrb[0].mxu0 %v1593
  %v1731 = vpop.f32.mrb[0].mxu0
  %v1732 = vadd.f32 0.0, %v1731
  %v1733 = vpop.f32.mrb[0].mxu0
  %1734 = vmatprep.mubr.f32.mxu0 0.0
  %1735 = vmatmul.mubr.f32.gmra.mrb[0].mxu0 %v1594
  %v1736 = vpop.f32.mrb[0].mxu0
  %v1737 = vadd.f32 0.0, %v1736
  %v1738 = vpop.f32.mrb[0].mxu0
  %1739 = vdwg.mxu0
  %1740 = vst.msk [vmem:[%s3] sm:$0xff] %vm71, %v1662
  %1741 = vst.msk [vmem:[%s3 + $0x8] sm:$0xff] %vm71, %v1667
  %1742 = vst.msk [vmem:[%s3 + $0x10] sm:$0xff] %vm71, %v1672
  %1743 = vst.msk [vmem:[%s3 + $0x18] sm:$0xff] %vm71, %v1677
  %1744 = vst.msk [vmem:[%s3 + $0x20] sm:$0xff] %vm71, %v1682
  %1745 = vst.msk [vmem:[%s3 + $0x28] sm:$0xff] %vm71, %v1687
  %1746 = vst.msk [vmem:[%s3 + $0x30] sm:$0xff] %vm71, %v1692
  %1747 = vst.msk [vmem:[%s3 + $0x38] sm:$0xff] %vm71, %v1697
  %1748 = vst.msk [vmem:[%s3 + $0x40] sm:$0xff] %vm71, %v1702
  %1749 = vst.msk [vmem:[%s3 + $0x48] sm:$0xff] %vm71, %v1707
  %1750 = vst.msk [vmem:[%s3 + $0x50] sm:$0xff] %vm71, %v1712
  %1751 = vst.msk [vmem:[%s3 + $0x58] sm:$0xff] %vm71, %v1717
  %1752 = vst.msk [vmem:[%s3 + $0x60] sm:$0xff] %vm71, %v1722
  %1753 = vst.msk [vmem:[%s3 + $0x68] sm:$0xff] %vm71, %v1727
  %1754 = vst.msk [vmem:[%s3 + $0x70] sm:$0xff] %vm71, %v1732
  %1755 = vst.msk [vmem:[%s3 + $0x78] sm:$0xff] %vm71, %v1737
  %v1756 = vmul.f32 %v16, %v16
  %v1757 = vmul.f32 %v17, %v17
  %v1758 = vmul.f32 %v18, %v18
  %v1759 = vmul.f32 %v19, %v19
  %v1760 = vmul.f32 %v20, %v20
  %v1761 = vmul.f32 %v21, %v21
  %v1762 = vmul.f32 %v22, %v22
  %v1763 = vmul.f32 %v23, %v23
  %v1764 = vmul.f32 %v24, %v24
  %v1765 = vmul.f32 %v25, %v25
  %v1766 = vmul.f32 %v26, %v26
  %v1767 = vmul.f32 %v27, %v27
  %v1768 = vmul.f32 %v28, %v28
  %v1769 = vmul.f32 %v29, %v29
  %v1770 = vmul.f32 %v30, %v30
  %v1771 = vmul.f32 %v31, %v31
  %v1772 = vsel %vm71, %v1756, 0.0
  %1773 = vadd.xlane.f32.xlu0 %v1772
  %v1774 = vpop.xlane.xlu0 %1773
  %v1775 = vsel %vm71, %v1757, 0.0
  %1776 = vadd.xlane.f32.xlu0 %v1775
  %v1777 = vpop.xlane.xlu0 %1776
  %v1778 = vsel %vm71, %v1758, 0.0
  %1779 = vadd.xlane.f32.xlu0 %v1778
  %v1780 = vpop.xlane.xlu0 %1779
  %v1781 = vsel %vm71, %v1759, 0.0
  %1782 = vadd.xlane.f32.xlu0 %v1781
  %v1783 = vpop.xlane.xlu0 %1782
  %v1784 = vsel %vm71, %v1760, 0.0
  %1785 = vadd.xlane.f32.xlu0 %v1784
  %v1786 = vpop.xlane.xlu0 %1785
  %v1787 = vsel %vm71, %v1761, 0.0
  %1788 = vadd.xlane.f32.xlu0 %v1787
  %v1789 = vpop.xlane.xlu0 %1788
  %v1790 = vsel %vm71, %v1762, 0.0
  %1791 = vadd.xlane.f32.xlu0 %v1790
  %v1792 = vpop.xlane.xlu0 %1791
  %v1793 = vsel %vm71, %v1763, 0.0
  %1794 = vadd.xlane.f32.xlu0 %v1793
  %v1795 = vpop.xlane.xlu0 %1794
  %v1796 = vsel %vm71, %v1764, 0.0
  %1797 = vadd.xlane.f32.xlu0 %v1796
  %v1798 = vpop.xlane.xlu0 %1797
  %v1799 = vsel %vm71, %v1765, 0.0
  %1800 = vadd.xlane.f32.xlu0 %v1799
  %v1801 = vpop.xlane.xlu0 %1800
  %v1802 = vsel %vm71, %v1766, 0.0
  %1803 = vadd.xlane.f32.xlu0 %v1802
  %v1804 = vpop.xlane.xlu0 %1803
  %v1805 = vsel %vm71, %v1767, 0.0
  %1806 = vadd.xlane.f32.xlu0 %v1805
  %v1807 = vpop.xlane.xlu0 %1806
  %v1808 = vsel %vm71, %v1768, 0.0
  %1809 = vadd.xlane.f32.xlu0 %v1808
  %v1810 = vpop.xlane.xlu0 %1809
  %v1811 = vsel %vm71, %v1769, 0.0
  %1812 = vadd.xlane.f32.xlu0 %v1811
  %v1813 = vpop.xlane.xlu0 %1812
  %v1814 = vsel %vm71, %v1770, 0.0
  %1815 = vadd.xlane.f32.xlu0 %v1814
  %v1816 = vpop.xlane.xlu0 %1815
  %v1817 = vsel %vm71, %v1771, 0.0
  %1818 = vadd.xlane.f32.xlu0 %v1817
  %v1819 = vpop.xlane.xlu0 %1818
  %vm1820 = vcmask 7168
  %v1821 = vsel %vm1820, %v636, %v956
  %v1822 = vsel %vm1820, %v638, %v958
  %v1823 = vsel %vm1820, %v640, %v960
  %v1824 = vsel %vm1820, %v642, %v962
  %v1825 = vsel %vm1820, %v644, %v964
  %v1826 = vsel %vm1820, %v646, %v966
  %v1827 = vsel %vm1820, %v648, %v968
  %v1828 = vsel %vm1820, %v650, %v970
  %v1829 = vsel %vm1820, %v652, %v972
  %v1830 = vsel %vm1820, %v654, %v974
  %v1831 = vsel %vm1820, %v656, %v976
  %v1832 = vsel %vm1820, %v658, %v978
  %v1833 = vsel %vm1820, %v660, %v980
  %v1834 = vsel %vm1820, %v662, %v982
  %v1835 = vsel %vm1820, %v664, %v984
  %v1836 = vsel %vm1820, %v666, %v986
  %vm1837 = vcmask 15360
  %v1838 = vsel %vm1837, %v1821, %v1276
  %v1839 = vsel %vm1837, %v1822, %v1278
  %v1840 = vsel %vm1837, %v1823, %v1280
  %v1841 = vsel %vm1837, %v1824, %v1282
  %v1842 = vsel %vm1837, %v1825, %v1284
  %v1843 = vsel %vm1837, %v1826, %v1286
  %v1844 = vsel %vm1837, %v1827, %v1288
  %v1845 = vsel %vm1837, %v1828, %v1290
  %v1846 = vsel %vm1837, %v1829, %v1292
  %v1847 = vsel %vm1837, %v1830, %v1294
  %v1848 = vsel %vm1837, %v1831, %v1296
  %v1849 = vsel %vm1837, %v1832, %v1298
  %v1850 = vsel %vm1837, %v1833, %v1300
  %v1851 = vsel %vm1837, %v1834, %v1302
  %v1852 = vsel %vm1837, %v1835, %v1304
  %v1853 = vsel %vm1837, %v1836, %v1306
  %v1854 = vadd.f32 %v1838, %v1774
  %v1855 = vadd.f32 %v1839, %v1777
  %v1856 = vadd.f32 %v1840, %v1780
  %v1857 = vadd.f32 %v1841, %v1783
  %v1858 = vadd.f32 %v1842, %v1786
  %v1859 = vadd.f32 %v1843, %v1789
  %v1860 = vadd.f32 %v1844, %v1792
  %v1861 = vadd.f32 %v1845, %v1795
  %v1862 = vadd.f32 %v1846, %v1798
  %v1863 = vadd.f32 %v1847, %v1801
  %v1864 = vadd.f32 %v1848, %v1804
  %v1865 = vadd.f32 %v1849, %v1807
  %v1866 = vadd.f32 %v1850, %v1810
  %v1867 = vadd.f32 %v1851, %v1813
  %v1868 = vadd.f32 %v1852, %v1816
  %v1869 = vadd.f32 %v1853, %v1819
  %v1870 = vmul.f32 %v1854, %v1854
  %v1871 = vmul.f32 %v1855, %v1855
  %v1872 = vmul.f32 %v1856, %v1856
  %v1873 = vmul.f32 %v1857, %v1857
  %v1874 = vmul.f32 %v1858, %v1858
  %v1875 = vmul.f32 %v1859, %v1859
  %v1876 = vmul.f32 %v1860, %v1860
  %v1877 = vmul.f32 %v1861, %v1861
  %v1878 = vmul.f32 %v1862, %v1862
  %v1879 = vmul.f32 %v1863, %v1863
  %v1880 = vmul.f32 %v1864, %v1864
  %v1881 = vmul.f32 %v1865, %v1865
  %v1882 = vmul.f32 %v1866, %v1866
  %v1883 = vmul.f32 %v1867, %v1867
  %v1884 = vmul.f32 %v1868, %v1868
  %v1885 = vmul.f32 %v1869, %v1869
  %vm1886 = vcmask 23552
  %v1887 = vsel %vm1886, %v1870, 0.0
  %1888 = vadd.xlane.f32.xlu0 %v1887
  %v1889 = vpop.xlane.xlu0 %1888
  %v1890 = vsel %vm1886, %v1871, 0.0
  %1891 = vadd.xlane.f32.xlu0 %v1890
  %v1892 = vpop.xlane.xlu0 %1891
  %v1893 = vsel %vm1886, %v1872, 0.0
  %1894 = vadd.xlane.f32.xlu0 %v1893
  %v1895 = vpop.xlane.xlu0 %1894
  %v1896 = vsel %vm1886, %v1873, 0.0
  %1897 = vadd.xlane.f32.xlu0 %v1896
  %v1898 = vpop.xlane.xlu0 %1897
  %v1899 = vsel %vm1886, %v1874, 0.0
  %1900 = vadd.xlane.f32.xlu0 %v1899
  %v1901 = vpop.xlane.xlu0 %1900
  %v1902 = vsel %vm1886, %v1875, 0.0
  %1903 = vadd.xlane.f32.xlu0 %v1902
  %v1904 = vpop.xlane.xlu0 %1903
  %v1905 = vsel %vm1886, %v1876, 0.0
  %1906 = vadd.xlane.f32.xlu0 %v1905
  %v1907 = vpop.xlane.xlu0 %1906
  %v1908 = vsel %vm1886, %v1877, 0.0
  %1909 = vadd.xlane.f32.xlu0 %v1908
  %v1910 = vpop.xlane.xlu0 %1909
  %v1911 = vsel %vm1886, %v1878, 0.0
  %1912 = vadd.xlane.f32.xlu0 %v1911
  %v1913 = vpop.xlane.xlu0 %1912
  %v1914 = vsel %vm1886, %v1879, 0.0
  %1915 = vadd.xlane.f32.xlu0 %v1914
  %v1916 = vpop.xlane.xlu0 %1915
  %v1917 = vsel %vm1886, %v1880, 0.0
  %1918 = vadd.xlane.f32.xlu0 %v1917
  %v1919 = vpop.xlane.xlu0 %1918
  %v1920 = vsel %vm1886, %v1881, 0.0
  %1921 = vadd.xlane.f32.xlu0 %v1920
  %v1922 = vpop.xlane.xlu0 %1921
  %v1923 = vsel %vm1886, %v1882, 0.0
  %1924 = vadd.xlane.f32.xlu0 %v1923
  %v1925 = vpop.xlane.xlu0 %1924
  %v1926 = vsel %vm1886, %v1883, 0.0
  %1927 = vadd.xlane.f32.xlu0 %v1926
  %v1928 = vpop.xlane.xlu0 %1927
  %v1929 = vsel %vm1886, %v1884, 0.0
  %1930 = vadd.xlane.f32.xlu0 %v1929
  %v1931 = vpop.xlane.xlu0 %1930
  %v1932 = vsel %vm1886, %v1885, 0.0
  %1933 = vadd.xlane.f32.xlu0 %v1932
  %v1934 = vpop.xlane.xlu0 %1933
  %v1935 = vrsqrt.pop %v1889
  %v1936 = vmul.f32 %v1889, %v1935
  %vm1937 = vcmp.eq.f32.partialorder %v1889, inf
  %v1938 = vsel %vm1937, %v1889, %v1936
  %vm1939 = vcmp.eq.f32.partialorder %v1889, 0.0
  %v1940 = vand.u32 %v1889, 2147483648
  %v1941 = vsel %vm1939, %v1940, %v1938
  %v1942 = vrsqrt.pop %v1892
  %v1943 = vmul.f32 %v1892, %v1942
  %vm1944 = vcmp.eq.f32.partialorder %v1892, inf
  %v1945 = vsel %vm1944, %v1892, %v1943
  %vm1946 = vcmp.eq.f32.partialorder %v1892, 0.0
  %v1947 = vand.u32 %v1892, 2147483648
  %v1948 = vsel %vm1946, %v1947, %v1945
  %v1949 = vrsqrt.pop %v1895
  %v1950 = vmul.f32 %v1895, %v1949
  %vm1951 = vcmp.eq.f32.partialorder %v1895, inf
  %v1952 = vsel %vm1951, %v1895, %v1950
  %vm1953 = vcmp.eq.f32.partialorder %v1895, 0.0
  %v1954 = vand.u32 %v1895, 2147483648
  %v1955 = vsel %vm1953, %v1954, %v1952
  %v1956 = vrsqrt.pop %v1898
  %v1957 = vmul.f32 %v1898, %v1956
  %vm1958 = vcmp.eq.f32.partialorder %v1898, inf
  %v1959 = vsel %vm1958, %v1898, %v1957
  %vm1960 = vcmp.eq.f32.partialorder %v1898, 0.0
  %v1961 = vand.u32 %v1898, 2147483648
  %v1962 = vsel %vm1960, %v1961, %v1959
  %v1963 = vrsqrt.pop %v1901
  %v1964 = vmul.f32 %v1901, %v1963
  %vm1965 = vcmp.eq.f32.partialorder %v1901, inf
  %v1966 = vsel %vm1965, %v1901, %v1964
  %vm1967 = vcmp.eq.f32.partialorder %v1901, 0.0
  %v1968 = vand.u32 %v1901, 2147483648
  %v1969 = vsel %vm1967, %v1968, %v1966
  %v1970 = vrsqrt.pop %v1904
  %v1971 = vmul.f32 %v1904, %v1970
  %vm1972 = vcmp.eq.f32.partialorder %v1904, inf
  %v1973 = vsel %vm1972, %v1904, %v1971
  %vm1974 = vcmp.eq.f32.partialorder %v1904, 0.0
  %v1975 = vand.u32 %v1904, 2147483648
  %v1976 = vsel %vm1974, %v1975, %v1973
  %v1977 = vrsqrt.pop %v1907
  %v1978 = vmul.f32 %v1907, %v1977
  %vm1979 = vcmp.eq.f32.partialorder %v1907, inf
  %v1980 = vsel %vm1979, %v1907, %v1978
  %vm1981 = vcmp.eq.f32.partialorder %v1907, 0.0
  %v1982 = vand.u32 %v1907, 2147483648
  %v1983 = vsel %vm1981, %v1982, %v1980
  %v1984 = vrsqrt.pop %v1910
  %v1985 = vmul.f32 %v1910, %v1984
  %vm1986 = vcmp.eq.f32.partialorder %v1910, inf
  %v1987 = vsel %vm1986, %v1910, %v1985
  %vm1988 = vcmp.eq.f32.partialorder %v1910, 0.0
  %v1989 = vand.u32 %v1910, 2147483648
  %v1990 = vsel %vm1988, %v1989, %v1987
  %v1991 = vrsqrt.pop %v1913
  %v1992 = vmul.f32 %v1913, %v1991
  %vm1993 = vcmp.eq.f32.partialorder %v1913, inf
  %v1994 = vsel %vm1993, %v1913, %v1992
  %vm1995 = vcmp.eq.f32.partialorder %v1913, 0.0
  %v1996 = vand.u32 %v1913, 2147483648
  %v1997 = vsel %vm1995, %v1996, %v1994
  %v1998 = vrsqrt.pop %v1916
  %v1999 = vmul.f32 %v1916, %v1998
  %vm2000 = vcmp.eq.f32.partialorder %v1916, inf
  %v2001 = vsel %vm2000, %v1916, %v1999
  %vm2002 = vcmp.eq.f32.partialorder %v1916, 0.0
  %v2003 = vand.u32 %v1916, 2147483648
  %v2004 = vsel %vm2002, %v2003, %v2001
  %v2005 = vrsqrt.pop %v1919
  %v2006 = vmul.f32 %v1919, %v2005
  %vm2007 = vcmp.eq.f32.partialorder %v1919, inf
  %v2008 = vsel %vm2007, %v1919, %v2006
  %vm2009 = vcmp.eq.f32.partialorder %v1919, 0.0
  %v2010 = vand.u32 %v1919, 2147483648
  %v2011 = vsel %vm2009, %v2010, %v2008
  %v2012 = vrsqrt.pop %v1922
  %v2013 = vmul.f32 %v1922, %v2012
  %vm2014 = vcmp.eq.f32.partialorder %v1922, inf
  %v2015 = vsel %vm2014, %v1922, %v2013
  %vm2016 = vcmp.eq.f32.partialorder %v1922, 0.0
  %v2017 = vand.u32 %v1922, 2147483648
  %v2018 = vsel %vm2016, %v2017, %v2015
  %v2019 = vrsqrt.pop %v1925
  %v2020 = vmul.f32 %v1925, %v2019
  %vm2021 = vcmp.eq.f32.partialorder %v1925, inf
  %v2022 = vsel %vm2021, %v1925, %v2020
  %vm2023 = vcmp.eq.f32.partialorder %v1925, 0.0
  %v2024 = vand.u32 %v1925, 2147483648
  %v2025 = vsel %vm2023, %v2024, %v2022
  %v2026 = vrsqrt.pop %v1928
  %v2027 = vmul.f32 %v1928, %v2026
  %vm2028 = vcmp.eq.f32.partialorder %v1928, inf
  %v2029 = vsel %vm2028, %v1928, %v2027
  %vm2030 = vcmp.eq.f32.partialorder %v1928, 0.0
  %v2031 = vand.u32 %v1928, 2147483648
  %v2032 = vsel %vm2030, %v2031, %v2029
  %v2033 = vrsqrt.pop %v1931
  %v2034 = vmul.f32 %v1931, %v2033
  %vm2035 = vcmp.eq.f32.partialorder %v1931, inf
  %v2036 = vsel %vm2035, %v1931, %v2034
  %vm2037 = vcmp.eq.f32.partialorder %v1931, 0.0
  %v2038 = vand.u32 %v1931, 2147483648
  %v2039 = vsel %vm2037, %v2038, %v2036
  %v2040 = vrsqrt.pop %v1934
  %v2041 = vmul.f32 %v1934, %v2040
  %vm2042 = vcmp.eq.f32.partialorder %v1934, inf
  %v2043 = vsel %vm2042, %v1934, %v2041
  %vm2044 = vcmp.eq.f32.partialorder %v1934, 0.0
  %v2045 = vand.u32 %v1934, 2147483648
  %v2046 = vsel %vm2044, %v2045, %v2043
  %v2047 = vmax.f32 %v1941, 1e-12
  %v2048 = vmax.f32 %v1948, 1e-12
  %v2049 = vmax.f32 %v1955, 1e-12
  %v2050 = vmax.f32 %v1962, 1e-12
  %v2051 = vmax.f32 %v1969, 1e-12
  %v2052 = vmax.f32 %v1976, 1e-12
  %v2053 = vmax.f32 %v1983, 1e-12
  %v2054 = vmax.f32 %v1990, 1e-12
  %v2055 = vmax.f32 %v1997, 1e-12
  %v2056 = vmax.f32 %v2004, 1e-12
  %v2057 = vmax.f32 %v2011, 1e-12
  %v2058 = vmax.f32 %v2018, 1e-12
  %v2059 = vmax.f32 %v2025, 1e-12
  %v2060 = vmax.f32 %v2032, 1e-12
  %v2061 = vmax.f32 %v2039, 1e-12
  %v2062 = vmax.f32 %v2046, 1e-12
  %v2063 = vrcp.pop %v2047
  %v2064 = vmul.f32 %v1854, %v2063
  %v2065 = vrcp.pop %v2048
  %v2066 = vmul.f32 %v1855, %v2065
  %v2067 = vrcp.pop %v2049
  %v2068 = vmul.f32 %v1856, %v2067
  %v2069 = vrcp.pop %v2050
  %v2070 = vmul.f32 %v1857, %v2069
  %v2071 = vrcp.pop %v2051
  %v2072 = vmul.f32 %v1858, %v2071
  %v2073 = vrcp.pop %v2052
  %v2074 = vmul.f32 %v1859, %v2073
  %v2075 = vrcp.pop %v2053
  %v2076 = vmul.f32 %v1860, %v2075
  %v2077 = vrcp.pop %v2054
  %v2078 = vmul.f32 %v1861, %v2077
  %v2079 = vrcp.pop %v2055
  %v2080 = vmul.f32 %v1862, %v2079
  %v2081 = vrcp.pop %v2056
  %v2082 = vmul.f32 %v1863, %v2081
  %v2083 = vrcp.pop %v2057
  %v2084 = vmul.f32 %v1864, %v2083
  %v2085 = vrcp.pop %v2058
  %v2086 = vmul.f32 %v1865, %v2085
  %v2087 = vrcp.pop %v2059
  %v2088 = vmul.f32 %v1866, %v2087
  %v2089 = vrcp.pop %v2060
  %v2090 = vmul.f32 %v1867, %v2089
  %v2091 = vrcp.pop %v2061
  %v2092 = vmul.f32 %v1868, %v2091
  %v2093 = vrcp.pop %v2062
  %v2094 = vmul.f32 %v1869, %v2093
  %v2095 = vadd.f32 %v2064, 0.0001
  %v2096 = vadd.f32 %v2066, 0.0001
  %v2097 = vadd.f32 %v2068, 0.0001
  %v2098 = vadd.f32 %v2070, 0.0001
  %v2099 = vadd.f32 %v2072, 0.0001
  %v2100 = vadd.f32 %v2074, 0.0001
  %v2101 = vadd.f32 %v2076, 0.0001
  %v2102 = vadd.f32 %v2078, 0.0001
  %v2103 = vadd.f32 %v2080, 0.0001
  %v2104 = vadd.f32 %v2082, 0.0001
  %v2105 = vadd.f32 %v2084, 0.0001
  %v2106 = vadd.f32 %v2086, 0.0001
  %v2107 = vadd.f32 %v2088, 0.0001
  %v2108 = vadd.f32 %v2090, 0.0001
  %v2109 = vadd.f32 %v2092, 0.0001
  %v2110 = vadd.f32 %v2094, 0.0001
  %v2111 = vrcp.pop %v2095
  %v2112 = vmul.f32 1.0, %v2111
  %v2113 = vrcp.pop %v2096
  %v2114 = vmul.f32 1.0, %v2113
  %v2115 = vrcp.pop %v2097
  %v2116 = vmul.f32 1.0, %v2115
  %v2117 = vrcp.pop %v2098
  %v2118 = vmul.f32 1.0, %v2117
  %v2119 = vrcp.pop %v2099
  %v2120 = vmul.f32 1.0, %v2119
  %v2121 = vrcp.pop %v2100
  %v2122 = vmul.f32 1.0, %v2121
  %v2123 = vrcp.pop %v2101
  %v2124 = vmul.f32 1.0, %v2123
  %v2125 = vrcp.pop %v2102
  %v2126 = vmul.f32 1.0, %v2125
  %v2127 = vrcp.pop %v2103
  %v2128 = vmul.f32 1.0, %v2127
  %v2129 = vrcp.pop %v2104
  %v2130 = vmul.f32 1.0, %v2129
  %v2131 = vrcp.pop %v2105
  %v2132 = vmul.f32 1.0, %v2131
  %v2133 = vrcp.pop %v2106
  %v2134 = vmul.f32 1.0, %v2133
  %v2135 = vrcp.pop %v2107
  %v2136 = vmul.f32 1.0, %v2135
  %v2137 = vrcp.pop %v2108
  %v2138 = vmul.f32 1.0, %v2137
  %v2139 = vrcp.pop %v2109
  %v2140 = vmul.f32 1.0, %v2139
  %v2141 = vrcp.pop %v2110
  %v2142 = vmul.f32 1.0, %v2141
  %v2143 = vsel %vm1886, %v2112, -inf
  %2144 = vmax.xlane.f32.xlu0 %v2143
  %v2145 = vpop.xlane.xlu0 %2144
  %v2146 = vsel %vm1886, %v2114, -inf
  %2147 = vmax.xlane.f32.xlu0 %v2146
  %v2148 = vpop.xlane.xlu0 %2147
  %v2149 = vsel %vm1886, %v2116, -inf
  %2150 = vmax.xlane.f32.xlu0 %v2149
  %v2151 = vpop.xlane.xlu0 %2150
  %v2152 = vsel %vm1886, %v2118, -inf
  %2153 = vmax.xlane.f32.xlu0 %v2152
  %v2154 = vpop.xlane.xlu0 %2153
  %v2155 = vsel %vm1886, %v2120, -inf
  %2156 = vmax.xlane.f32.xlu0 %v2155
  %v2157 = vpop.xlane.xlu0 %2156
  %v2158 = vsel %vm1886, %v2122, -inf
  %2159 = vmax.xlane.f32.xlu0 %v2158
  %v2160 = vpop.xlane.xlu0 %2159
  %v2161 = vsel %vm1886, %v2124, -inf
  %2162 = vmax.xlane.f32.xlu0 %v2161
  %v2163 = vpop.xlane.xlu0 %2162
  %v2164 = vsel %vm1886, %v2126, -inf
  %2165 = vmax.xlane.f32.xlu0 %v2164
  %v2166 = vpop.xlane.xlu0 %2165
  %v2167 = vsel %vm1886, %v2128, -inf
  %2168 = vmax.xlane.f32.xlu0 %v2167
  %v2169 = vpop.xlane.xlu0 %2168
  %v2170 = vsel %vm1886, %v2130, -inf
  %2171 = vmax.xlane.f32.xlu0 %v2170
  %v2172 = vpop.xlane.xlu0 %2171
  %v2173 = vsel %vm1886, %v2132, -inf
  %2174 = vmax.xlane.f32.xlu0 %v2173
  %v2175 = vpop.xlane.xlu0 %2174
  %v2176 = vsel %vm1886, %v2134, -inf
  %2177 = vmax.xlane.f32.xlu0 %v2176
  %v2178 = vpop.xlane.xlu0 %2177
  %v2179 = vsel %vm1886, %v2136, -inf
  %2180 = vmax.xlane.f32.xlu0 %v2179
  %v2181 = vpop.xlane.xlu0 %2180
  %v2182 = vsel %vm1886, %v2138, -inf
  %2183 = vmax.xlane.f32.xlu0 %v2182
  %v2184 = vpop.xlane.xlu0 %2183
  %v2185 = vsel %vm1886, %v2140, -inf
  %2186 = vmax.xlane.f32.xlu0 %v2185
  %v2187 = vpop.xlane.xlu0 %2186
  %v2188 = vsel %vm1886, %v2142, -inf
  %2189 = vmax.xlane.f32.xlu0 %v2188
  %v2190 = vpop.xlane.xlu0 %2189
  %v2191 = vsub.f32 %v2112, %v2145
  %v2192 = vsub.f32 %v2114, %v2148
  %v2193 = vsub.f32 %v2116, %v2151
  %v2194 = vsub.f32 %v2118, %v2154
  %v2195 = vsub.f32 %v2120, %v2157
  %v2196 = vsub.f32 %v2122, %v2160
  %v2197 = vsub.f32 %v2124, %v2163
  %v2198 = vsub.f32 %v2126, %v2166
  %v2199 = vsub.f32 %v2128, %v2169
  %v2200 = vsub.f32 %v2130, %v2172
  %v2201 = vsub.f32 %v2132, %v2175
  %v2202 = vsub.f32 %v2134, %v2178
  %v2203 = vsub.f32 %v2136, %v2181
  %v2204 = vsub.f32 %v2138, %v2184
  %v2205 = vsub.f32 %v2140, %v2187
  %v2206 = vsub.f32 %v2142, %v2190
  %v2207 = vmul.f32 %v2191, 1.442695
  %v2208 = vpow.pop %v2207
  %v2209 = vmul.f32 %v2192, 1.442695
  %v2210 = vpow.pop %v2209
  %v2211 = vmul.f32 %v2193, 1.442695
  %v2212 = vpow.pop %v2211
  %v2213 = vmul.f32 %v2194, 1.442695
  %v2214 = vpow.pop %v2213
  %v2215 = vmul.f32 %v2195, 1.442695
  %v2216 = vpow.pop %v2215
  %v2217 = vmul.f32 %v2196, 1.442695
  %v2218 = vpow.pop %v2217
  %v2219 = vmul.f32 %v2197, 1.442695
  %v2220 = vpow.pop %v2219
  %v2221 = vmul.f32 %v2198, 1.442695
  %v2222 = vpow.pop %v2221
  %v2223 = vmul.f32 %v2199, 1.442695
  %v2224 = vpow.pop %v2223
  %v2225 = vmul.f32 %v2200, 1.442695
  %v2226 = vpow.pop %v2225
  %v2227 = vmul.f32 %v2201, 1.442695
  %v2228 = vpow.pop %v2227
  %v2229 = vmul.f32 %v2202, 1.442695
  %v2230 = vpow.pop %v2229
  %v2231 = vmul.f32 %v2203, 1.442695
  %v2232 = vpow.pop %v2231
  %v2233 = vmul.f32 %v2204, 1.442695
  %v2234 = vpow.pop %v2233
  %v2235 = vmul.f32 %v2205, 1.442695
  %v2236 = vpow.pop %v2235
  %v2237 = vmul.f32 %v2206, 1.442695
  %v2238 = vpow.pop %v2237
  %v2239 = vsel %vm1886, %v2208, 0.0
  %2240 = vadd.xlane.f32.xlu0 %v2239
  %v2241 = vpop.xlane.xlu0 %2240
  %v2242 = vsel %vm1886, %v2210, 0.0
  %2243 = vadd.xlane.f32.xlu0 %v2242
  %v2244 = vpop.xlane.xlu0 %2243
  %v2245 = vsel %vm1886, %v2212, 0.0
  %2246 = vadd.xlane.f32.xlu0 %v2245
  %v2247 = vpop.xlane.xlu0 %2246
  %v2248 = vsel %vm1886, %v2214, 0.0
  %2249 = vadd.xlane.f32.xlu0 %v2248
  %v2250 = vpop.xlane.xlu0 %2249
  %v2251 = vsel %vm1886, %v2216, 0.0
  %2252 = vadd.xlane.f32.xlu0 %v2251
  %v2253 = vpop.xlane.xlu0 %2252
  %v2254 = vsel %vm1886, %v2218, 0.0
  %2255 = vadd.xlane.f32.xlu0 %v2254
  %v2256 = vpop.xlane.xlu0 %2255
  %v2257 = vsel %vm1886, %v2220, 0.0
  %2258 = vadd.xlane.f32.xlu0 %v2257
  %v2259 = vpop.xlane.xlu0 %2258
  %v2260 = vsel %vm1886, %v2222, 0.0
  %2261 = vadd.xlane.f32.xlu0 %v2260
  %v2262 = vpop.xlane.xlu0 %2261
  %v2263 = vsel %vm1886, %v2224, 0.0
  %2264 = vadd.xlane.f32.xlu0 %v2263
  %v2265 = vpop.xlane.xlu0 %2264
  %v2266 = vsel %vm1886, %v2226, 0.0
  %2267 = vadd.xlane.f32.xlu0 %v2266
  %v2268 = vpop.xlane.xlu0 %2267
  %v2269 = vsel %vm1886, %v2228, 0.0
  %2270 = vadd.xlane.f32.xlu0 %v2269
  %v2271 = vpop.xlane.xlu0 %2270
  %v2272 = vsel %vm1886, %v2230, 0.0
  %2273 = vadd.xlane.f32.xlu0 %v2272
  %v2274 = vpop.xlane.xlu0 %2273
  %v2275 = vsel %vm1886, %v2232, 0.0
  %2276 = vadd.xlane.f32.xlu0 %v2275
  %v2277 = vpop.xlane.xlu0 %2276
  %v2278 = vsel %vm1886, %v2234, 0.0
  %2279 = vadd.xlane.f32.xlu0 %v2278
  %v2280 = vpop.xlane.xlu0 %2279
  %v2281 = vsel %vm1886, %v2236, 0.0
  %2282 = vadd.xlane.f32.xlu0 %v2281
  %v2283 = vpop.xlane.xlu0 %2282
  %v2284 = vsel %vm1886, %v2238, 0.0
  %2285 = vadd.xlane.f32.xlu0 %v2284
  %v2286 = vpop.xlane.xlu0 %2285
  %v2287 = vrcp.pop %v2241
  %v2288 = vmul.f32 %v2208, %v2287
  %v2289 = vrcp.pop %v2244
  %v2290 = vmul.f32 %v2210, %v2289
  %v2291 = vrcp.pop %v2247
  %v2292 = vmul.f32 %v2212, %v2291
  %v2293 = vrcp.pop %v2250
  %v2294 = vmul.f32 %v2214, %v2293
  %v2295 = vrcp.pop %v2253
  %v2296 = vmul.f32 %v2216, %v2295
  %v2297 = vrcp.pop %v2256
  %v2298 = vmul.f32 %v2218, %v2297
  %v2299 = vrcp.pop %v2259
  %v2300 = vmul.f32 %v2220, %v2299
  %v2301 = vrcp.pop %v2262
  %v2302 = vmul.f32 %v2222, %v2301
  %v2303 = vrcp.pop %v2265
  %v2304 = vmul.f32 %v2224, %v2303
  %v2305 = vrcp.pop %v2268
  %v2306 = vmul.f32 %v2226, %v2305
  %v2307 = vrcp.pop %v2271
  %v2308 = vmul.f32 %v2228, %v2307
  %v2309 = vrcp.pop %v2274
  %v2310 = vmul.f32 %v2230, %v2309
  %v2311 = vrcp.pop %v2277
  %v2312 = vmul.f32 %v2232, %v2311
  %v2313 = vrcp.pop %v2280
  %v2314 = vmul.f32 %v2234, %v2313
  %v2315 = vrcp.pop %v2283
  %v2316 = vmul.f32 %v2236, %v2315
  %v2317 = vrcp.pop %v2286
  %v2318 = vmul.f32 %v2238, %v2317
  %2335 = vrot.lane.b32.xlu0 %v2288, 4
  %v2336 = vpop.permute.xlu0 %2335
  %2337 = vrot.lane.b32.xlu0 %v2290, 4
  %v2338 = vpop.permute.xlu0 %2337
  %2339 = vrot.lane.b32.xlu0 %v2292, 4
  %v2340 = vpop.permute.xlu0 %2339
  %2341 = vrot.lane.b32.xlu0 %v2294, 4
  %v2342 = vpop.permute.xlu0 %2341
  %2343 = vrot.lane.b32.xlu0 %v2296, 4
  %v2344 = vpop.permute.xlu0 %2343
  %2345 = vrot.lane.b32.xlu0 %v2298, 4
  %v2346 = vpop.permute.xlu0 %2345
  %2347 = vrot.lane.b32.xlu0 %v2300, 4
  %v2348 = vpop.permute.xlu0 %2347
  %2349 = vrot.lane.b32.xlu0 %v2302, 4
  %v2350 = vpop.permute.xlu0 %2349
  %2351 = vrot.lane.b32.xlu0 %v2304, 4
  %v2352 = vpop.permute.xlu0 %2351
  %2353 = vrot.lane.b32.xlu0 %v2306, 4
  %v2354 = vpop.permute.xlu0 %2353
  %2355 = vrot.lane.b32.xlu0 %v2308, 4
  %v2356 = vpop.permute.xlu0 %2355
  %2357 = vrot.lane.b32.xlu0 %v2310, 4
  %v2358 = vpop.permute.xlu0 %2357
  %2359 = vrot.lane.b32.xlu0 %v2312, 4
  %v2360 = vpop.permute.xlu0 %2359
  %2361 = vrot.lane.b32.xlu0 %v2314, 4
  %v2362 = vpop.permute.xlu0 %2361
  %2363 = vrot.lane.b32.xlu0 %v2316, 4
  %v2364 = vpop.permute.xlu0 %2363
  %2365 = vrot.lane.b32.xlu0 %v2318, 4
  %v2366 = vpop.permute.xlu0 %2365
  %v2367 = vsel %vm1820, %v392, %v712
  %v2368 = vsel %vm1820, %v406, %v726
  %v2369 = vsel %vm1820, %v420, %v740
  %v2370 = vsel %vm1820, %v434, %v754
  %v2371 = vsel %vm1820, %v448, %v768
  %v2372 = vsel %vm1820, %v462, %v782
  %v2373 = vsel %vm1820, %v476, %v796
  %v2374 = vsel %vm1820, %v490, %v810
  %v2375 = vsel %vm1820, %v504, %v824
  %v2376 = vsel %vm1820, %v518, %v838
  %v2377 = vsel %vm1820, %v532, %v852
  %v2378 = vsel %vm1820, %v546, %v866
  %v2379 = vsel %vm1820, %v560, %v880
  %v2380 = vsel %vm1820, %v574, %v894
  %v2381 = vsel %vm1820, %v588, %v908
  %v2382 = vsel %vm1820, %v602, %v922
  %v2383 = vsel %vm1837, %v2367, %v1032
  %v2384 = vsel %vm1837, %v2368, %v1046
  %v2385 = vsel %vm1837, %v2369, %v1060
  %v2386 = vsel %vm1837, %v2370, %v1074
  %v2387 = vsel %vm1837, %v2371, %v1088
  %v2388 = vsel %vm1837, %v2372, %v1102
  %v2389 = vsel %vm1837, %v2373, %v1116
  %v2390 = vsel %vm1837, %v2374, %v1130
  %v2391 = vsel %vm1837, %v2375, %v1144
  %v2392 = vsel %vm1837, %v2376, %v1158
  %v2393 = vsel %vm1837, %v2377, %v1172
  %v2394 = vsel %vm1837, %v2378, %v1186
  %v2395 = vsel %vm1837, %v2379, %v1200
  %v2396 = vsel %vm1837, %v2380, %v1214
  %v2397 = vsel %vm1837, %v2381, %v1228
  %v2398 = vsel %vm1837, %v2382, %v1242
  %v2399 = vsel %vm1886, %v2383, %v1352
  %v2400 = vsel %vm1886, %v2384, %v1366
  %v2401 = vsel %vm1886, %v2385, %v1380
  %v2402 = vsel %vm1886, %v2386, %v1394
  %v2403 = vsel %vm1886, %v2387, %v1408
  %v2404 = vsel %vm1886, %v2388, %v1422
  %v2405 = vsel %vm1886, %v2389, %v1436
  %v2406 = vsel %vm1886, %v2390, %v1450
  %v2407 = vsel %vm1886, %v2391, %v1464
  %v2408 = vsel %vm1886, %v2392, %v1478
  %v2409 = vsel %vm1886, %v2393, %v1492
  %v2410 = vsel %vm1886, %v2394, %v1506
  %v2411 = vsel %vm1886, %v2395, %v1520
  %v2412 = vsel %vm1886, %v2396, %v1534
  %v2413 = vsel %vm1886, %v2397, %v1548
  %v2414 = vsel %vm1886, %v2398, %v1562
  %vm2415 = vcmask 31744
  %v2416 = vsel %vm2415, %v2399, %v2336
  %v2417 = vsel %vm2415, %v2400, %v2338
  %v2418 = vsel %vm2415, %v2401, %v2340
  %v2419 = vsel %vm2415, %v2402, %v2342
  %v2420 = vsel %vm2415, %v2403, %v2344
  %v2421 = vsel %vm2415, %v2404, %v2346
  %v2422 = vsel %vm2415, %v2405, %v2348
  %v2423 = vsel %vm2415, %v2406, %v2350
  %v2424 = vsel %vm2415, %v2407, %v2352
  %v2425 = vsel %vm2415, %v2408, %v2354
  %v2426 = vsel %vm2415, %v2409, %v2356
  %v2427 = vsel %vm2415, %v2410, %v2358
  %v2428 = vsel %vm2415, %v2411, %v2360
  %v2429 = vsel %vm2415, %v2412, %v2362
  %v2430 = vsel %vm2415, %v2413, %v2364
  %v2431 = vsel %vm2415, %v2414, %v2366
  %vm2432 = vcmask 56320
  %v2433 = vsel %vm2432, %v2416, 0
  %v2434 = vsel %vm2432, %v2417, 0
  %v2435 = vsel %vm2432, %v2418, 0
  %v2436 = vsel %vm2432, %v2419, 0
  %v2437 = vsel %vm2432, %v2420, 0
  %v2438 = vsel %vm2432, %v2421, 0
  %v2439 = vsel %vm2432, %v2422, 0
  %v2440 = vsel %vm2432, %v2423, 0
  %v2441 = vsel %vm2432, %v2424, 0
  %v2442 = vsel %vm2432, %v2425, 0
  %v2443 = vsel %vm2432, %v2426, 0
  %v2444 = vsel %vm2432, %v2427, 0
  %v2445 = vsel %vm2432, %v2428, 0
  %v2446 = vsel %vm2432, %v2429, 0
  %v2447 = vsel %vm2432, %v2430, 0
  %v2448 = vsel %vm2432, %v2431, 0
  %vm2449 = vcmask 64512
  %2450 = vst.msk [vmem:[%s4] sm:$0xff] %vm2449, %v2433
  %2451 = vst.msk [vmem:[%s4 + $0x8] sm:$0xff] %vm2449, %v2434
  %2452 = vst.msk [vmem:[%s4 + $0x10] sm:$0xff] %vm2449, %v2435
  %2453 = vst.msk [vmem:[%s4 + $0x18] sm:$0xff] %vm2449, %v2436
  %2454 = vst.msk [vmem:[%s4 + $0x20] sm:$0xff] %vm2449, %v2437
  %2455 = vst.msk [vmem:[%s4 + $0x28] sm:$0xff] %vm2449, %v2438
  %2456 = vst.msk [vmem:[%s4 + $0x30] sm:$0xff] %vm2449, %v2439
  %2457 = vst.msk [vmem:[%s4 + $0x38] sm:$0xff] %vm2449, %v2440
  %2458 = vst.msk [vmem:[%s4 + $0x40] sm:$0xff] %vm2449, %v2441
  %2459 = vst.msk [vmem:[%s4 + $0x48] sm:$0xff] %vm2449, %v2442
  %2460 = vst.msk [vmem:[%s4 + $0x50] sm:$0xff] %vm2449, %v2443
  %2461 = vst.msk [vmem:[%s4 + $0x58] sm:$0xff] %vm2449, %v2444
  %2462 = vst.msk [vmem:[%s4 + $0x60] sm:$0xff] %vm2449, %v2445
  %2463 = vst.msk [vmem:[%s4 + $0x68] sm:$0xff] %vm2449, %v2446
  %2464 = vst.msk [vmem:[%s4 + $0x70] sm:$0xff] %vm2449, %v2447
  %2465 = vst.msk [vmem:[%s4 + $0x78] sm:$0xff] %vm2449, %v2448
  // Predicated region
  $region14: #{soho_pre_vd_forward.1} parent=0 // pred_check
    _
  $region15: #{soho_pre_vd_forward.1} parent=0 // pred_check_branch
    %2467 = sbr.rel (0) target = $region17
  $region16: #{soho_pre_vd_forward.1} parent=0 // pred_region
    _
  $region17: #{soho_pre_vd_forward.1} parent=0 // pred_fallthru
    _
  // Predicated region
  $region18: #{soho_pre_vd_forward.1} parent=0 // pred_check
    _
  $region19: #{soho_pre_vd_forward.1} parent=0 // pred_check_branch
    %2469 = sbr.rel (0) target = $region21
  $region20: #{soho_pre_vd_forward.1} parent=0 // pred_region
    _
  $region21: #{soho_pre_vd_forward.1} parent=0 // pred_fallthru
    _
  // Predicated region
  $region22: #{soho_pre_vd_forward.1} parent=0 // pred_check
    _
  $region23: #{soho_pre_vd_forward.1} parent=0 // pred_check_branch
    %2471 = sbr.rel (0) target = $region25
  $region24: #{soho_pre_vd_forward.1} parent=0 // pred_region
    _
  $region25: #{soho_pre_vd_forward.1} parent=0 // pred_fallthru
    _
  // Predicated region
  $region26: #{soho_pre_vd_forward.1} parent=0 // pred_check
    _
  $region27: #{soho_pre_vd_forward.1} parent=0 // pred_check_branch
    %2473 = sbr.rel (0) target = $region29
  $region28: #{soho_pre_vd_forward.1} parent=0 // pred_region
    _
  $region29: #{soho_pre_vd_forward.1} parent=0 // pred_fallthru
    _

</llo_original>
